<compile_context>
chip_gen: v7x
topology: tpu7x:2x2x1
jax: 0.10.0
libtpu: 0.0.40
codegen_flags: <defaults>
</compile_context>

<pallas_src>
import math

import jax
import jax.numpy as jnp
import numpy as np
from jax.experimental import pallas as pl
from jax.experimental.pallas import tpu as pltpu

# ---------------- hyper-parameters (small, consistent with the module) ----------------
D_MODEL = 32
HEADS = 4
DK = D_MODEL // HEADS
FEED_DIM = 64
FEED_PAD = 128          # FFN hidden zero-padded to full lane width (exact numerics)
N_LAYER = 2
VOCAB = 48
VOCAB_PAD = 128         # final projection padded to full lane width, sliced in wrapper
SEQ = 8
MEM_SEQ = 8
BATCH = 2
MAX_SEQ = 60
EPS = 1e-5              # nn.LayerNorm default

assert N_LAYER * 2 * D_MODEL == 128  # hoisted cross-K/V weight is exactly lane-dense


# ---------------------------------- kernel helpers ----------------------------------
def _layernorm(x, g, b):
    mu = jnp.mean(x, axis=-1, keepdims=True)
    var = jnp.mean((x - mu) ** 2, axis=-1, keepdims=True)
    return (x - mu) * jax.lax.rsqrt(var + EPS) * g + b


# ------------------------------------- kernel ---------------------------------------
def fused_decoder_kernel(x0_ref, mem_ref, sbias_ref, cbias_ref, hmask_ref,
                         wqkv_ref, wqc_ref, wkvc_ref, wf1_ref, wf2_ref, wl_ref,
                         v32_ref, b96_ref, v128_ref,
                         out_ref):
    f32 = jnp.float32
    bf16 = jnp.bfloat16

    # ---- prenorm: LayerNorm(emb*sqrt(D) + pos_enc)  (emb+pe precombined in wrapper) ----
    x = _layernorm(x0_ref[...], v32_ref[0:1, :], v32_ref[1:2, :])        # (BS, D) f32

    # ---- hoisted once across all layers ----
    hmask = hmask_ref[...]            # (H*BS, D) 0/1 per-head lane masks (row-block h)
    self_bias = sbias_ref[...]        # (H*BS, BS)  additive mask, pre-scaled by 1/sqrt(dk)
    cross_bias = cbias_ref[...]       # (H*BS, B*Sm)
    mem_bf = mem_ref[...]             # (B*Sm, D) bf16
    # cross-attention K/V for EVERY layer in a single (16,32)@(32,128) matmul
    kv_cross = jnp.dot(mem_bf, wkvc_ref[...],
                       preferred_element_type=f32) + v128_ref[0:1, :]    # (B*Sm, 128)

    def attention_core(q, k, v, bias, residual, g, b):
        # Heads stacked along sublanes: row-block h of qb keeps only head-h columns of q,
        # so ONE matmul yields all per-head score blocks (no lane slicing, no reshapes).
        n = residual.shape[0]
        qb = jnp.concatenate([q] * HEADS, axis=0) * hmask                # (H*n, D)
        s = jax.lax.dot_general(qb.astype(bf16), k.astype(bf16),
                                (((1,), (1,)), ((), ())),
                                preferred_element_type=f32)              # (H*n, nk)
        s = s + bias                                                     # pre-scaled mask
        m = jnp.max(s, axis=-1, keepdims=True)
        e = jnp.exp(s - m)
        p = e * pl.reciprocal(jnp.sum(e, axis=-1, keepdims=True), approx=True)
        full = jnp.dot(p.astype(bf16), v.astype(bf16),
                       preferred_element_type=f32) * hmask               # (H*n, D)
        att = full[0:n, :]
        for h in range(1, HEADS):                                        # tile-aligned slices
            att = att + full[h * n:(h + 1) * n, :]
        return _layernorm(att + residual, g, b)

    for l in range(N_LAYER):                                             # static unroll
        base = 2 + 8 * l
        # 1) masked self-attention: fused Q/K/V projection (q & bias pre-scaled by 1/sqrt(dk))
        qkv = jnp.dot(x.astype(bf16), wqkv_ref[l],
                      preferred_element_type=f32) + b96_ref[l:l + 1, :]  # (BS, 96)
        x = attention_core(qkv[:, 0:D_MODEL],
                           qkv[:, D_MODEL:2 * D_MODEL],
                           qkv[:, 2 * D_MODEL:3 * D_MODEL],
                           self_bias, x,
                           v32_ref[base:base + 1, :], v32_ref[base + 1:base + 2, :])
        # 2) cross-attention against encoder memory (K/V hoisted above; no causal mask)
        qc = jnp.dot(x.astype(bf16), wqc_ref[l],
                     preferred_element_type=f32) + v32_ref[base + 2:base + 3, :]
        kc = kv_cross[:, 2 * l * D_MODEL:(2 * l + 1) * D_MODEL]
        vc = kv_cross[:, (2 * l + 1) * D_MODEL:(2 * l + 2) * D_MODEL]
        x = attention_core(qc, kc, vc, cross_bias, x,
                           v32_ref[base + 3:base + 4, :], v32_ref[base + 4:base + 5, :])
        # 3) feed-forward (hidden zero-padded to 128 lanes; ReLU(0)=0 & zero rows -> exact)
        temp = x
        ff = jnp.dot(x.astype(bf16), wf1_ref[l],
                     preferred_element_type=f32) + v128_ref[1 + l:2 + l, :]
        ff = jnp.maximum(ff, 0.0)
        ff = jnp.dot(ff.astype(bf16), wf2_ref[l],
                     preferred_element_type=f32) + v32_ref[base + 5:base + 6, :]
        x = _layernorm(ff + temp, v32_ref[base + 6:base + 7, :], v32_ref[base + 7:base + 8, :])

    # ---- final vocab projection (padded to 128 lanes -> unmasked store; sliced in wrapper) ----
    out_ref[...] = jnp.dot(x.astype(bf16), wl_ref[...],
                           preferred_element_type=f32) + v128_ref[1 + N_LAYER:2 + N_LAYER, :]


# ------------------------------------ wrapper ----------------------------------------
def run_fused_decoder(inputs, rows, cols):
    return pl.pallas_call(
        fused_decoder_kernel,
        out_shape=jax.ShapeDtypeStruct((rows, cols), jnp.float32),
        in_specs=[pl.BlockSpec(memory_space=pltpu.MemorySpace.VMEM) for _ in inputs],
        out_specs=pl.BlockSpec(memory_space=pltpu.MemorySpace.VMEM),
    )(*inputs)


def pallas_decoder(memory, trg, trg_mask, params):
    B, S = trg.shape
    Sm = memory.shape[1]
    BS = B * S
    BSm = B * Sm
    scale = 1.0 / math.sqrt(DK)

    # ---- plain-JAX glue: embedding gather, pos-enc, flattening ----
    x0 = (params['emb'][trg] * math.sqrt(D_MODEL)
          + params['pos_enc'][:, :S]).reshape(BS, D_MODEL).astype(jnp.float32)
    mem_bf = memory.reshape(BSm, D_MODEL).astype(jnp.bfloat16)

    # additive attention biases (0 keep / -1e9 masked), pre-scaled by 1/sqrt(dk),
    # block-diagonal over batch, tiled over heads along the sublane (row) axis
    eye_b = jnp.eye(B, dtype=jnp.float32)
    keep_self = jnp.einsum('bc,bij->bicj', eye_b,
                           trg_mask.astype(jnp.float32)).reshape(BS, BS)
    self_bias = jnp.where(keep_self > 0, 0.0, -1e9) * scale
    qb_idx = jnp.repeat(jnp.arange(B), S)
    kb_idx = jnp.repeat(jnp.arange(B), Sm)
    cross_bias = jnp.where(qb_idx[:, None] == kb_idx[None, :], 0.0, -1e9) * scale
    self_bias_t = jnp.tile(self_bias, (HEADS, 1)).astype(jnp.float32)    # (H*BS, BS)
    cross_bias_t = jnp.tile(cross_bias, (HEADS, 1)).astype(jnp.float32)  # (H*BS, B*Sm)

    # per-head lane masks broadcast over rows: row h*BS+i keeps columns [h*DK,(h+1)*DK)
    row_head = jnp.repeat(jnp.arange(HEADS), BS)
    col_head = jnp.arange(D_MODEL) // DK
    head_masks_b = (row_head[:, None] == col_head[None, :]).astype(jnp.float32)

    # ---- pack weights / small vectors ----
    vec32_rows = [params['norm_g'][0], params['norm_b'][0]]
    b96_rows, kvb_frags, ffn1_bias_rows = [], [], []
    wqkv_l, wqc_l, wkv_l, wf1_l, wf2_l = [], [], [], [], []
    for lp in params['layers']:
        (wq1, bq1, wk1, bk1, wv1, bv1, g1, be1,
         wq2, bq2, wk2, bk2, wv2, bv2, g2, be2,
         w1, bb1, w2, bb2, gf, bef) = lp
        wqkv_l.append(jnp.concatenate([wq1 * scale, wk1, wv1], axis=1))        # (D, 3D)
        b96_rows.append(jnp.concatenate([bq1[0] * scale, bk1[0], bv1[0]]))     # (3D,)
        wqc_l.append(wq2 * scale)                                              # (D, D)
        wkv_l.append(jnp.concatenate([wk2, wv2], axis=1))                      # (D, 2D)
        kvb_frags += [bk2[0], bv2[0]]
        wf1_l.append(jnp.pad(w1, ((0, 0), (0, FEED_PAD - FEED_DIM))))          # (D, 128)
        ffn1_bias_rows.append(jnp.pad(bb1[0], (0, FEED_PAD - FEED_DIM)))
        wf2_l.append(jnp.pad(w2, ((0, FEED_PAD - FEED_DIM), (0, 0))))          # (128, D)
        vec32_rows += [g1[0], be1[0], bq2[0] * scale, g2[0], be2[0],
                       bb2[0], gf[0], bef[0]]

    w_qkv_self = jnp.stack(wqkv_l).astype(jnp.bfloat16)                 # (L, D, 3D)
    w_q_cross = jnp.stack(wqc_l).astype(jnp.bfloat16)                   # (L, D, D)
    w_kv_cross = jnp.concatenate(wkv_l, axis=1).astype(jnp.bfloat16)    # (D, L*2D)=(32,128)
    w_ffn1 = jnp.stack(wf1_l).astype(jnp.bfloat16)                      # (L, D, 128)
    w_ffn2 = jnp.stack(wf2_l).astype(jnp.bfloat16)                      # (L, 128, D)
    w_last = jnp.pad(params['wl'],
                     ((0, 0), (0, VOCAB_PAD - VOCAB))).astype(jnp.bfloat16)    # (D, 128)

    vec32 = jnp.stack(vec32_rows).astype(jnp.float32)                   # (2+8L, D)
    bias96 = jnp.stack(b96_rows).astype(jnp.float32)                    # (L, 3D)
    vec128 = jnp.stack([jnp.concatenate(kvb_frags)]                     # (1+L+1, 128)
                       + ffn1_bias_rows
                       + [jnp.pad(params['bl'][0],
                                  (0, VOCAB_PAD - VOCAB))]).astype(jnp.float32)

    inputs = [x0, mem_bf, self_bias_t, cross_bias_t, head_masks_b,
              w_qkv_self, w_q_cross, w_kv_cross, w_ffn1, w_ffn2, w_last,
              vec32, bias96, vec128]

    out_pad = run_fused_decoder(inputs, BS, VOCAB_PAD)
    return out_pad[:, :VOCAB].reshape(B, S, VOCAB)


# ------------------------------ parameters / reference -------------------------------
def make_pos_enc():
    pos = jnp.arange(MAX_SEQ, dtype=jnp.float32).reshape(1, -1, 1)
    d = jnp.arange(D_MODEL, dtype=jnp.float32).reshape(1, 1, -1)
    phase = pos / jnp.power(10000.0, d / D_MODEL)
    even = (jnp.arange(D_MODEL).reshape(1, 1, -1) % 2) == 0
    return jnp.where(even, jnp.sin(phase), jnp.cos(phase))  # (1, MAX_SEQ, D)


def init_params(key):
    keys = jax.random.split(key, 64)
    it = iter(keys)

    def lin(in_f, out_f):
        w = jax.random.normal(next(it), (in_f, out_f), jnp.float32) / math.sqrt(in_f)
        b = jax.random.normal(next(it), (1, out_f), jnp.float32) * 0.01
        return w, b

    params = {
        'emb': jax.random.normal(next(it), (VOCAB, D_MODEL), jnp.float32) * 0.1,
        'norm_g': jnp.ones((1, D_MODEL), jnp.float32),
        'norm_b': jnp.zeros((1, D_MODEL), jnp.float32),
        'pos_enc': make_pos_enc(),
    }
    layers = []
    for _ in range(N_LAYER):
        lp = []
        for _ in range(3):                      # self-attn q, k, v
            w, b = lin(D_MODEL, D_MODEL); lp += [w, b]
        lp += [jnp.ones((1, D_MODEL), jnp.float32), jnp.zeros((1, D_MODEL), jnp.float32)]
        for _ in range(3):                      # cross-attn q, k, v
            w, b = lin(D_MODEL, D_MODEL); lp += [w, b]
        lp += [jnp.ones((1, D_MODEL), jnp.float32), jnp.zeros((1, D_MODEL), jnp.float32)]
        w, b = lin(D_MODEL, FEED_DIM); lp += [w, b]     # ffn linear1
        w, b = lin(FEED_DIM, D_MODEL); lp += [w, b]     # ffn linear2
        lp += [jnp.ones((1, D_MODEL), jnp.float32), jnp.zeros((1, D_MODEL), jnp.float32)]
        layers.append(tuple(lp))
    params['layers'] = layers
    params['wl'], params['bl'] = lin(D_MODEL, VOCAB)
    return params


def _ref_ln(x, g, b):
    mu = x.mean(-1, keepdims=True)
    var = ((x - mu) ** 2).mean(-1, keepdims=True)
    return (x - mu) / jnp.sqrt(var + EPS) * g + b


def _ref_mha(q_in, k_in, v_in, wq, bq, wk, bk, wv, bv, g, be, mask):
    temp = q_in
    q = q_in @ wq + bq[0]
    k = k_in @ wk + bk[0]
    v = v_in @ wv + bv[0]
    B, Sq, D = q.shape
    Sk = k.shape[1]
    qh = q.reshape(B, Sq, HEADS, DK).transpose(0, 2, 1, 3)
    kh = k.reshape(B, Sk, HEADS, DK).transpose(0, 2, 1, 3)
    vh = v.reshape(B, Sk, HEADS, DK).transpose(0, 2, 1, 3)
    att = qh @ kh.transpose(0, 1, 3, 2)
    if mask is not None:
        att = jnp.where(mask[:, None] == 0, -1e9, att)
    att = jax.nn.softmax(att / math.sqrt(DK), axis=-1)
    o = (att @ vh).transpose(0, 2, 1, 3).reshape(B, Sq, D)
    return _ref_ln(o + temp, g[0], be[0])


def reference_decoder(memory, trg, trg_mask, params):
    x = params['emb'][trg]
    x = x * math.sqrt(D_MODEL) + params['pos_enc'][:, :trg.shape[1]]
    x = _ref_ln(x, params['norm_g'][0], params['norm_b'][0])
    for lp in params['layers']:
        (wq1, bq1, wk1, bk1, wv1, bv1, g1, be1,
         wq2, bq2, wk2, bk2, wv2, bv2, g2, be2,
         w1, bb1, w2, bb2, gf, bef) = lp
        x = _ref_mha(x, x, x, wq1, bq1, wk1, bk1, wv1, bv1, g1, be1, trg_mask)
        x = _ref_mha(x, memory, memory, wq2, bq2, wk2, bk2, wv2, bv2, g2, be2, None)
        temp = x
        h = jnp.maximum(x @ w1 + bb1[0], 0.0)
        h = h @ w2 + bb2[0]
        x = _ref_ln(h + temp, gf[0], bef[0])
    return x @ params['wl'] + params['bl'][0]


# --------------------------------------- main -----------------------------------------
if __name__ == "__main__":
    key = jax.random.PRNGKey(0)
    kp, kt, km = jax.random.split(key, 3)
    params = init_params(kp)

    trg = jax.random.randint(kt, (BATCH, SEQ), 0, VOCAB, dtype=jnp.int32)
    memory = jax.random.normal(km, (BATCH, MEM_SEQ, D_MODEL), jnp.float32)
    trg_mask = jnp.asarray(
        jnp.broadcast_to(jnp.tril(jnp.ones((SEQ, SEQ), jnp.int32)), (BATCH, SEQ, SEQ)),
        jnp.int32)

    out = jax.block_until_ready(pallas_decoder(memory, trg, trg_mask, params))
    ref = jax.block_until_ready(reference_decoder(memory, trg, trg_mask, params))

    # bf16 matmul operands inside the kernel -> slightly looser tolerance than pure f32
    np.testing.assert_allclose(np.asarray(out), np.asarray(ref), rtol=5e-2, atol=5e-2)
    print("KERNEL_OK")
</pallas_src>

<mosaic_0001>
module attributes {stable_mosaic.version = 11 : i64} {
  func.func @fused_decoder_kernel(%arg0: memref<16x32xf32, #tpu.memory_space<vmem>>, %arg1: memref<16x32xbf16, #tpu.memory_space<vmem>>, %arg2: memref<64x16xf32, #tpu.memory_space<vmem>>, %arg3: memref<64x16xf32, #tpu.memory_space<vmem>>, %arg4: memref<64x32xf32, #tpu.memory_space<vmem>>, %arg5: memref<2x32x96xbf16, #tpu.memory_space<vmem>>, %arg6: memref<2x32x32xbf16, #tpu.memory_space<vmem>>, %arg7: memref<32x128xbf16, #tpu.memory_space<vmem>>, %arg8: memref<2x32x128xbf16, #tpu.memory_space<vmem>>, %arg9: memref<2x128x32xbf16, #tpu.memory_space<vmem>>, %arg10: memref<32x128xbf16, #tpu.memory_space<vmem>>, %arg11: memref<18x32xf32, #tpu.memory_space<vmem>>, %arg12: memref<2x96xf32, #tpu.memory_space<vmem>>, %arg13: memref<4x128xf32, #tpu.memory_space<vmem>>, %arg14: memref<16x128xf32, #tpu.memory_space<vmem>>) attributes {dimension_semantics = [], scalar_prefetch = 0 : i64, scratch_operands = 0 : i64, tpu.core_type = #tpu.core_type<tc>} {
    %c0 = arith.constant 0 : index
    %c0_0 = arith.constant 0 : index
    %0 = vector.load %arg0[%c0, %c0_0] : memref<16x32xf32, #tpu.memory_space<vmem>>, vector<16x32xf32>
    %c0_1 = arith.constant 0 : index
    %c0_2 = arith.constant 0 : index
    %1 = vector.load %arg11[%c0_1, %c0_2] : memref<18x32xf32, #tpu.memory_space<vmem>>, vector<1x32xf32>
    %c1 = arith.constant 1 : index
    %c0_3 = arith.constant 0 : index
    %2 = vector.load %arg11[%c1, %c0_3] : memref<18x32xf32, #tpu.memory_space<vmem>>, vector<1x32xf32>
    %cst = arith.constant dense<0.000000e+00> : vector<16xf32>
    %3 = vector.multi_reduction <add>, %0, %cst [1] : vector<16x32xf32> to vector<16xf32>
    %4 = vector.shape_cast %3 : vector<16xf32> to vector<16x1xf32>
    %cst_4 = arith.constant 3.200000e+01 : f32
    %5 = vector.broadcast %cst_4 : f32 to vector<16x1xf32>
    %6 = arith.divf %4, %5 : vector<16x1xf32>
    %7 = vector.broadcast %6 : vector<16x1xf32> to vector<16x32xf32>
    %8 = arith.subf %0, %7 : vector<16x32xf32>
    %9 = arith.mulf %8, %8 : vector<16x32xf32>
    %cst_5 = arith.constant dense<0.000000e+00> : vector<16xf32>
    %10 = vector.multi_reduction <add>, %9, %cst_5 [1] : vector<16x32xf32> to vector<16xf32>
    %11 = vector.shape_cast %10 : vector<16xf32> to vector<16x1xf32>
    %cst_6 = arith.constant 3.200000e+01 : f32
    %12 = vector.broadcast %cst_6 : f32 to vector<16x1xf32>
    %13 = arith.divf %11, %12 : vector<16x1xf32>
    %14 = vector.broadcast %6 : vector<16x1xf32> to vector<16x32xf32>
    %15 = arith.subf %0, %14 : vector<16x32xf32>
    %cst_7 = arith.constant 9.99999974E-6 : f32
    %16 = vector.broadcast %cst_7 : f32 to vector<16x1xf32>
    %17 = arith.addf %13, %16 : vector<16x1xf32>
    %18 = math.rsqrt %17 : vector<16x1xf32>
    %19 = vector.broadcast %18 : vector<16x1xf32> to vector<16x32xf32>
    %20 = arith.mulf %15, %19 : vector<16x32xf32>
    %21 = vector.broadcast %1 : vector<1x32xf32> to vector<16x32xf32>
    %22 = arith.mulf %20, %21 : vector<16x32xf32>
    %23 = vector.broadcast %2 : vector<1x32xf32> to vector<16x32xf32>
    %24 = arith.addf %22, %23 : vector<16x32xf32>
    %c0_8 = arith.constant 0 : index
    %c0_9 = arith.constant 0 : index
    %25 = vector.load %arg4[%c0_8, %c0_9] : memref<64x32xf32, #tpu.memory_space<vmem>>, vector<64x32xf32>
    %c0_10 = arith.constant 0 : index
    %c0_11 = arith.constant 0 : index
    %26 = vector.load %arg2[%c0_10, %c0_11] : memref<64x16xf32, #tpu.memory_space<vmem>>, vector<64x16xf32>
    %c0_12 = arith.constant 0 : index
    %c0_13 = arith.constant 0 : index
    %27 = vector.load %arg3[%c0_12, %c0_13] : memref<64x16xf32, #tpu.memory_space<vmem>>, vector<64x16xf32>
    %c0_14 = arith.constant 0 : index
    %c0_15 = arith.constant 0 : index
    %28 = vector.load %arg1[%c0_14, %c0_15] : memref<16x32xbf16, #tpu.memory_space<vmem>>, vector<16x32xbf16>
    %c0_16 = arith.constant 0 : index
    %c0_17 = arith.constant 0 : index
    %29 = vector.load %arg7[%c0_16, %c0_17] : memref<32x128xbf16, #tpu.memory_space<vmem>>, vector<32x128xbf16>
    %cst_18 = arith.constant dense<0.000000e+00> : vector<16x128xf32>
    %30 = tpu.matmul %28, %29, %cst_18 {dimension_numbers = #tpu.dot_dimension_numbers<[1], [0], [0], [1], [0, 0, 1, 1], [], []>} : vector<16x32xbf16>, vector<32x128xbf16>, vector<16x128xf32> -> vector<16x128xf32>
    %c0_19 = arith.constant 0 : index
    %c0_20 = arith.constant 0 : index
    %31 = vector.load %arg13[%c0_19, %c0_20] : memref<4x128xf32, #tpu.memory_space<vmem>>, vector<1x128xf32>
    %32 = vector.broadcast %31 : vector<1x128xf32> to vector<16x128xf32>
    %33 = arith.addf %30, %32 : vector<16x128xf32>
    %34 = arith.truncf %24 : vector<16x32xf32> to vector<16x32xbf16>
    %c0_21 = arith.constant 0 : index
    %c0_22 = arith.constant 0 : index
    %c0_23 = arith.constant 0 : index
    %35 = vector.load %arg5[%c0_21, %c0_22, %c0_23] : memref<2x32x96xbf16, #tpu.memory_space<vmem>>, vector<1x32x96xbf16>
    %36 = vector.shape_cast %35 : vector<1x32x96xbf16> to vector<32x96xbf16>
    %cst_24 = arith.constant dense<0.000000e+00> : vector<16x96xf32>
    %37 = tpu.matmul %34, %36, %cst_24 {dimension_numbers = #tpu.dot_dimension_numbers<[1], [0], [0], [1], [0, 0, 1, 1], [], []>} : vector<16x32xbf16>, vector<32x96xbf16>, vector<16x96xf32> -> vector<16x96xf32>
    %c0_25 = arith.constant 0 : index
    %c0_26 = arith.constant 0 : index
    %38 = vector.load %arg12[%c0_25, %c0_26] : memref<2x96xf32, #tpu.memory_space<vmem>>, vector<1x96xf32>
    %39 = vector.broadcast %38 : vector<1x96xf32> to vector<16x96xf32>
    %40 = arith.addf %37, %39 : vector<16x96xf32>
    %41 = vector.extract_strided_slice %40 {offsets = [0, 0], sizes = [16, 32], strides = [1, 1]} : vector<16x96xf32> to vector<16x32xf32>
    %42 = vector.extract_strided_slice %40 {offsets = [0, 32], sizes = [16, 32], strides = [1, 1]} : vector<16x96xf32> to vector<16x32xf32>
    %43 = vector.extract_strided_slice %40 {offsets = [0, 64], sizes = [16, 32], strides = [1, 1]} : vector<16x96xf32> to vector<16x32xf32>
    %c2 = arith.constant 2 : index
    %c0_27 = arith.constant 0 : index
    %44 = vector.load %arg11[%c2, %c0_27] : memref<18x32xf32, #tpu.memory_space<vmem>>, vector<1x32xf32>
    %c3 = arith.constant 3 : index
    %c0_28 = arith.constant 0 : index
    %45 = vector.load %arg11[%c3, %c0_28] : memref<18x32xf32, #tpu.memory_space<vmem>>, vector<1x32xf32>
    %46 = tpu.concatenate %41, %41, %41, %41 in 0 : vector<16x32xf32>, vector<16x32xf32>, vector<16x32xf32>, vector<16x32xf32> -> vector<64x32xf32>
    %47 = arith.mulf %46, %25 : vector<64x32xf32>
    %48 = arith.truncf %47 : vector<64x32xf32> to vector<64x32xbf16>
    %49 = arith.truncf %42 : vector<16x32xf32> to vector<16x32xbf16>
    %cst_29 = arith.constant dense<0.000000e+00> : vector<64x16xf32>
    %50 = tpu.matmul %48, %49, %cst_29 {dimension_numbers = #tpu.dot_dimension_numbers<[1], [1], [0], [0], [0, 0, 1, 0], [], []>} : vector<64x32xbf16>, vector<16x32xbf16>, vector<64x16xf32> -> vector<64x16xf32>
    %51 = arith.addf %50, %26 : vector<64x16xf32>
    %cst_30 = arith.constant dense<0xFF800000> : vector<64xf32>
    %52 = vector.multi_reduction <maximumf>, %51, %cst_30 [1] : vector<64x16xf32> to vector<64xf32>
    %53 = vector.shape_cast %52 : vector<64xf32> to vector<64x1xf32>
    %54 = vector.broadcast %53 : vector<64x1xf32> to vector<64x16xf32>
    %55 = arith.subf %51, %54 : vector<64x16xf32>
    %56 = math.exp %55 : vector<64x16xf32>
    %cst_31 = arith.constant dense<0.000000e+00> : vector<64xf32>
    %57 = vector.multi_reduction <add>, %56, %cst_31 [1] : vector<64x16xf32> to vector<64xf32>
    %58 = vector.shape_cast %57 : vector<64xf32> to vector<64x1xf32>
    %59 = tpu.reciprocal %58 {approx = true} : vector<64x1xf32> -> vector<64x1xf32>
    %60 = vector.broadcast %59 : vector<64x1xf32> to vector<64x16xf32>
    %61 = arith.mulf %56, %60 : vector<64x16xf32>
    %62 = arith.truncf %61 : vector<64x16xf32> to vector<64x16xbf16>
    %63 = arith.truncf %43 : vector<16x32xf32> to vector<16x32xbf16>
    %cst_32 = arith.constant dense<0.000000e+00> : vector<64x32xf32>
    %64 = tpu.matmul %62, %63, %cst_32 {dimension_numbers = #tpu.dot_dimension_numbers<[1], [0], [0], [1], [0, 0, 1, 1], [], []>} : vector<64x16xbf16>, vector<16x32xbf16>, vector<64x32xf32> -> vector<64x32xf32>
    %65 = arith.mulf %64, %25 : vector<64x32xf32>
    %66 = vector.extract_strided_slice %65 {offsets = [0, 0], sizes = [16, 32], strides = [1, 1]} : vector<64x32xf32> to vector<16x32xf32>
    %67 = vector.extract_strided_slice %65 {offsets = [16, 0], sizes = [16, 32], strides = [1, 1]} : vector<64x32xf32> to vector<16x32xf32>
    %68 = arith.addf %66, %67 : vector<16x32xf32>
    %69 = vector.extract_strided_slice %65 {offsets = [32, 0], sizes = [16, 32], strides = [1, 1]} : vector<64x32xf32> to vector<16x32xf32>
    %70 = arith.addf %68, %69 : vector<16x32xf32>
    %71 = vector.extract_strided_slice %65 {offsets = [48, 0], sizes = [16, 32], strides = [1, 1]} : vector<64x32xf32> to vector<16x32xf32>
    %72 = arith.addf %70, %71 : vector<16x32xf32>
    %73 = arith.addf %72, %24 : vector<16x32xf32>
    %cst_33 = arith.constant dense<0.000000e+00> : vector<16xf32>
    %74 = vector.multi_reduction <add>, %73, %cst_33 [1] : vector<16x32xf32> to vector<16xf32>
    %75 = vector.shape_cast %74 : vector<16xf32> to vector<16x1xf32>
    %cst_34 = arith.constant 3.200000e+01 : f32
    %76 = vector.broadcast %cst_34 : f32 to vector<16x1xf32>
    %77 = arith.divf %75, %76 : vector<16x1xf32>
    %78 = vector.broadcast %77 : vector<16x1xf32> to vector<16x32xf32>
    %79 = arith.subf %73, %78 : vector<16x32xf32>
    %80 = arith.mulf %79, %79 : vector<16x32xf32>
    %cst_35 = arith.constant dense<0.000000e+00> : vector<16xf32>
    %81 = vector.multi_reduction <add>, %80, %cst_35 [1] : vector<16x32xf32> to vector<16xf32>
    %82 = vector.shape_cast %81 : vector<16xf32> to vector<16x1xf32>
    %cst_36 = arith.constant 3.200000e+01 : f32
    %83 = vector.broadcast %cst_36 : f32 to vector<16x1xf32>
    %84 = arith.divf %82, %83 : vector<16x1xf32>
    %85 = vector.broadcast %77 : vector<16x1xf32> to vector<16x32xf32>
    %86 = arith.subf %73, %85 : vector<16x32xf32>
    %cst_37 = arith.constant 9.99999974E-6 : f32
    %87 = vector.broadcast %cst_37 : f32 to vector<16x1xf32>
    %88 = arith.addf %84, %87 : vector<16x1xf32>
    %89 = math.rsqrt %88 : vector<16x1xf32>
    %90 = vector.broadcast %89 : vector<16x1xf32> to vector<16x32xf32>
    %91 = arith.mulf %86, %90 : vector<16x32xf32>
    %92 = vector.broadcast %44 : vector<1x32xf32> to vector<16x32xf32>
    %93 = arith.mulf %91, %92 : vector<16x32xf32>
    %94 = vector.broadcast %45 : vector<1x32xf32> to vector<16x32xf32>
    %95 = arith.addf %93, %94 : vector<16x32xf32>
    %96 = arith.truncf %95 : vector<16x32xf32> to vector<16x32xbf16>
    %c0_38 = arith.constant 0 : index
    %c0_39 = arith.constant 0 : index
    %c0_40 = arith.constant 0 : index
    %97 = vector.load %arg6[%c0_38, %c0_39, %c0_40] : memref<2x32x32xbf16, #tpu.memory_space<vmem>>, vector<1x32x32xbf16>
    %98 = vector.shape_cast %97 : vector<1x32x32xbf16> to vector<32x32xbf16>
    %cst_41 = arith.constant dense<0.000000e+00> : vector<16x32xf32>
    %99 = tpu.matmul %96, %98, %cst_41 {dimension_numbers = #tpu.dot_dimension_numbers<[1], [0], [0], [1], [0, 0, 1, 1], [], []>} : vector<16x32xbf16>, vector<32x32xbf16>, vector<16x32xf32> -> vector<16x32xf32>
    %c4 = arith.constant 4 : index
    %c0_42 = arith.constant 0 : index
    %100 = vector.load %arg11[%c4, %c0_42] : memref<18x32xf32, #tpu.memory_space<vmem>>, vector<1x32xf32>
    %101 = vector.broadcast %100 : vector<1x32xf32> to vector<16x32xf32>
    %102 = arith.addf %99, %101 : vector<16x32xf32>
    %103 = vector.extract_strided_slice %33 {offsets = [0, 0], sizes = [16, 32], strides = [1, 1]} : vector<16x128xf32> to vector<16x32xf32>
    %104 = vector.extract_strided_slice %33 {offsets = [0, 32], sizes = [16, 32], strides = [1, 1]} : vector<16x128xf32> to vector<16x32xf32>
    %c5 = arith.constant 5 : index
    %c0_43 = arith.constant 0 : index
    %105 = vector.load %arg11[%c5, %c0_43] : memref<18x32xf32, #tpu.memory_space<vmem>>, vector<1x32xf32>
    %c6 = arith.constant 6 : index
    %c0_44 = arith.constant 0 : index
    %106 = vector.load %arg11[%c6, %c0_44] : memref<18x32xf32, #tpu.memory_space<vmem>>, vector<1x32xf32>
    %107 = tpu.concatenate %102, %102, %102, %102 in 0 : vector<16x32xf32>, vector<16x32xf32>, vector<16x32xf32>, vector<16x32xf32> -> vector<64x32xf32>
    %108 = arith.mulf %107, %25 : vector<64x32xf32>
    %109 = arith.truncf %108 : vector<64x32xf32> to vector<64x32xbf16>
    %110 = arith.truncf %103 : vector<16x32xf32> to vector<16x32xbf16>
    %cst_45 = arith.constant dense<0.000000e+00> : vector<64x16xf32>
    %111 = tpu.matmul %109, %110, %cst_45 {dimension_numbers = #tpu.dot_dimension_numbers<[1], [1], [0], [0], [0, 0, 1, 0], [], []>} : vector<64x32xbf16>, vector<16x32xbf16>, vector<64x16xf32> -> vector<64x16xf32>
    %112 = arith.addf %111, %27 : vector<64x16xf32>
    %cst_46 = arith.constant dense<0xFF800000> : vector<64xf32>
    %113 = vector.multi_reduction <maximumf>, %112, %cst_46 [1] : vector<64x16xf32> to vector<64xf32>
    %114 = vector.shape_cast %113 : vector<64xf32> to vector<64x1xf32>
    %115 = vector.broadcast %114 : vector<64x1xf32> to vector<64x16xf32>
    %116 = arith.subf %112, %115 : vector<64x16xf32>
    %117 = math.exp %116 : vector<64x16xf32>
    %cst_47 = arith.constant dense<0.000000e+00> : vector<64xf32>
    %118 = vector.multi_reduction <add>, %117, %cst_47 [1] : vector<64x16xf32> to vector<64xf32>
    %119 = vector.shape_cast %118 : vector<64xf32> to vector<64x1xf32>
    %120 = tpu.reciprocal %119 {approx = true} : vector<64x1xf32> -> vector<64x1xf32>
    %121 = vector.broadcast %120 : vector<64x1xf32> to vector<64x16xf32>
    %122 = arith.mulf %117, %121 : vector<64x16xf32>
    %123 = arith.truncf %122 : vector<64x16xf32> to vector<64x16xbf16>
    %124 = arith.truncf %104 : vector<16x32xf32> to vector<16x32xbf16>
    %cst_48 = arith.constant dense<0.000000e+00> : vector<64x32xf32>
    %125 = tpu.matmul %123, %124, %cst_48 {dimension_numbers = #tpu.dot_dimension_numbers<[1], [0], [0], [1], [0, 0, 1, 1], [], []>} : vector<64x16xbf16>, vector<16x32xbf16>, vector<64x32xf32> -> vector<64x32xf32>
    %126 = arith.mulf %125, %25 : vector<64x32xf32>
    %127 = vector.extract_strided_slice %126 {offsets = [0, 0], sizes = [16, 32], strides = [1, 1]} : vector<64x32xf32> to vector<16x32xf32>
    %128 = vector.extract_strided_slice %126 {offsets = [16, 0], sizes = [16, 32], strides = [1, 1]} : vector<64x32xf32> to vector<16x32xf32>
    %129 = arith.addf %127, %128 : vector<16x32xf32>
    %130 = vector.extract_strided_slice %126 {offsets = [32, 0], sizes = [16, 32], strides = [1, 1]} : vector<64x32xf32> to vector<16x32xf32>
    %131 = arith.addf %129, %130 : vector<16x32xf32>
    %132 = vector.extract_strided_slice %126 {offsets = [48, 0], sizes = [16, 32], strides = [1, 1]} : vector<64x32xf32> to vector<16x32xf32>
    %133 = arith.addf %131, %132 : vector<16x32xf32>
    %134 = arith.addf %133, %95 : vector<16x32xf32>
    %cst_49 = arith.constant dense<0.000000e+00> : vector<16xf32>
    %135 = vector.multi_reduction <add>, %134, %cst_49 [1] : vector<16x32xf32> to vector<16xf32>
    %136 = vector.shape_cast %135 : vector<16xf32> to vector<16x1xf32>
    %cst_50 = arith.constant 3.200000e+01 : f32
    %137 = vector.broadcast %cst_50 : f32 to vector<16x1xf32>
    %138 = arith.divf %136, %137 : vector<16x1xf32>
    %139 = vector.broadcast %138 : vector<16x1xf32> to vector<16x32xf32>
    %140 = arith.subf %134, %139 : vector<16x32xf32>
    %141 = arith.mulf %140, %140 : vector<16x32xf32>
    %cst_51 = arith.constant dense<0.000000e+00> : vector<16xf32>
    %142 = vector.multi_reduction <add>, %141, %cst_51 [1] : vector<16x32xf32> to vector<16xf32>
    %143 = vector.shape_cast %142 : vector<16xf32> to vector<16x1xf32>
    %cst_52 = arith.constant 3.200000e+01 : f32
    %144 = vector.broadcast %cst_52 : f32 to vector<16x1xf32>
    %145 = arith.divf %143, %144 : vector<16x1xf32>
    %146 = vector.broadcast %138 : vector<16x1xf32> to vector<16x32xf32>
    %147 = arith.subf %134, %146 : vector<16x32xf32>
    %cst_53 = arith.constant 9.99999974E-6 : f32
    %148 = vector.broadcast %cst_53 : f32 to vector<16x1xf32>
    %149 = arith.addf %145, %148 : vector<16x1xf32>
    %150 = math.rsqrt %149 : vector<16x1xf32>
    %151 = vector.broadcast %150 : vector<16x1xf32> to vector<16x32xf32>
    %152 = arith.mulf %147, %151 : vector<16x32xf32>
    %153 = vector.broadcast %105 : vector<1x32xf32> to vector<16x32xf32>
    %154 = arith.mulf %152, %153 : vector<16x32xf32>
    %155 = vector.broadcast %106 : vector<1x32xf32> to vector<16x32xf32>
    %156 = arith.addf %154, %155 : vector<16x32xf32>
    %157 = arith.truncf %156 : vector<16x32xf32> to vector<16x32xbf16>
    %c0_54 = arith.constant 0 : index
    %c0_55 = arith.constant 0 : index
    %c0_56 = arith.constant 0 : index
    %158 = vector.load %arg8[%c0_54, %c0_55, %c0_56] : memref<2x32x128xbf16, #tpu.memory_space<vmem>>, vector<1x32x128xbf16>
    %159 = vector.shape_cast %158 : vector<1x32x128xbf16> to vector<32x128xbf16>
    %cst_57 = arith.constant dense<0.000000e+00> : vector<16x128xf32>
    %160 = tpu.matmul %157, %159, %cst_57 {dimension_numbers = #tpu.dot_dimension_numbers<[1], [0], [0], [1], [0, 0, 1, 1], [], []>} : vector<16x32xbf16>, vector<32x128xbf16>, vector<16x128xf32> -> vector<16x128xf32>
    %c1_58 = arith.constant 1 : index
    %c0_59 = arith.constant 0 : index
    %161 = vector.load %arg13[%c1_58, %c0_59] : memref<4x128xf32, #tpu.memory_space<vmem>>, vector<1x128xf32>
    %162 = vector.broadcast %161 : vector<1x128xf32> to vector<16x128xf32>
    %163 = arith.addf %160, %162 : vector<16x128xf32>
    %cst_60 = arith.constant 0.000000e+00 : f32
    %164 = vector.broadcast %cst_60 : f32 to vector<16x128xf32>
    %165 = arith.maximumf %163, %164 : vector<16x128xf32>
    %166 = arith.truncf %165 : vector<16x128xf32> to vector<16x128xbf16>
    %c0_61 = arith.constant 0 : index
    %c0_62 = arith.constant 0 : index
    %c0_63 = arith.constant 0 : index
    %167 = vector.load %arg9[%c0_61, %c0_62, %c0_63] : memref<2x128x32xbf16, #tpu.memory_space<vmem>>, vector<1x128x32xbf16>
    %168 = vector.shape_cast %167 : vector<1x128x32xbf16> to vector<128x32xbf16>
    %cst_64 = arith.constant dense<0.000000e+00> : vector<16x32xf32>
    %169 = tpu.matmul %166, %168, %cst_64 {dimension_numbers = #tpu.dot_dimension_numbers<[1], [0], [0], [1], [0, 0, 1, 1], [], []>} : vector<16x128xbf16>, vector<128x32xbf16>, vector<16x32xf32> -> vector<16x32xf32>
    %c7 = arith.constant 7 : index
    %c0_65 = arith.constant 0 : index
    %170 = vector.load %arg11[%c7, %c0_65] : memref<18x32xf32, #tpu.memory_space<vmem>>, vector<1x32xf32>
    %171 = vector.broadcast %170 : vector<1x32xf32> to vector<16x32xf32>
    %172 = arith.addf %169, %171 : vector<16x32xf32>
    %173 = arith.addf %172, %156 : vector<16x32xf32>
    %c8 = arith.constant 8 : index
    %c0_66 = arith.constant 0 : index
    %174 = vector.load %arg11[%c8, %c0_66] : memref<18x32xf32, #tpu.memory_space<vmem>>, vector<1x32xf32>
    %c9 = arith.constant 9 : index
    %c0_67 = arith.constant 0 : index
    %175 = vector.load %arg11[%c9, %c0_67] : memref<18x32xf32, #tpu.memory_space<vmem>>, vector<1x32xf32>
    %cst_68 = arith.constant dense<0.000000e+00> : vector<16xf32>
    %176 = vector.multi_reduction <add>, %173, %cst_68 [1] : vector<16x32xf32> to vector<16xf32>
    %177 = vector.shape_cast %176 : vector<16xf32> to vector<16x1xf32>
    %cst_69 = arith.constant 3.200000e+01 : f32
    %178 = vector.broadcast %cst_69 : f32 to vector<16x1xf32>
    %179 = arith.divf %177, %178 : vector<16x1xf32>
    %180 = vector.broadcast %179 : vector<16x1xf32> to vector<16x32xf32>
    %181 = arith.subf %173, %180 : vector<16x32xf32>
    %182 = arith.mulf %181, %181 : vector<16x32xf32>
    %cst_70 = arith.constant dense<0.000000e+00> : vector<16xf32>
    %183 = vector.multi_reduction <add>, %182, %cst_70 [1] : vector<16x32xf32> to vector<16xf32>
    %184 = vector.shape_cast %183 : vector<16xf32> to vector<16x1xf32>
    %cst_71 = arith.constant 3.200000e+01 : f32
    %185 = vector.broadcast %cst_71 : f32 to vector<16x1xf32>
    %186 = arith.divf %184, %185 : vector<16x1xf32>
    %187 = vector.broadcast %179 : vector<16x1xf32> to vector<16x32xf32>
    %188 = arith.subf %173, %187 : vector<16x32xf32>
    %cst_72 = arith.constant 9.99999974E-6 : f32
    %189 = vector.broadcast %cst_72 : f32 to vector<16x1xf32>
    %190 = arith.addf %186, %189 : vector<16x1xf32>
    %191 = math.rsqrt %190 : vector<16x1xf32>
    %192 = vector.broadcast %191 : vector<16x1xf32> to vector<16x32xf32>
    %193 = arith.mulf %188, %192 : vector<16x32xf32>
    %194 = vector.broadcast %174 : vector<1x32xf32> to vector<16x32xf32>
    %195 = arith.mulf %193, %194 : vector<16x32xf32>
    %196 = vector.broadcast %175 : vector<1x32xf32> to vector<16x32xf32>
    %197 = arith.addf %195, %196 : vector<16x32xf32>
    %198 = arith.truncf %197 : vector<16x32xf32> to vector<16x32xbf16>
    %c1_73 = arith.constant 1 : index
    %c0_74 = arith.constant 0 : index
    %c0_75 = arith.constant 0 : index
    %199 = vector.load %arg5[%c1_73, %c0_74, %c0_75] : memref<2x32x96xbf16, #tpu.memory_space<vmem>>, vector<1x32x96xbf16>
    %200 = vector.shape_cast %199 : vector<1x32x96xbf16> to vector<32x96xbf16>
    %cst_76 = arith.constant dense<0.000000e+00> : vector<16x96xf32>
    %201 = tpu.matmul %198, %200, %cst_76 {dimension_numbers = #tpu.dot_dimension_numbers<[1], [0], [0], [1], [0, 0, 1, 1], [], []>} : vector<16x32xbf16>, vector<32x96xbf16>, vector<16x96xf32> -> vector<16x96xf32>
    %c1_77 = arith.constant 1 : index
    %c0_78 = arith.constant 0 : index
    %202 = vector.load %arg12[%c1_77, %c0_78] : memref<2x96xf32, #tpu.memory_space<vmem>>, vector<1x96xf32>
    %203 = vector.broadcast %202 : vector<1x96xf32> to vector<16x96xf32>
    %204 = arith.addf %201, %203 : vector<16x96xf32>
    %205 = vector.extract_strided_slice %204 {offsets = [0, 0], sizes = [16, 32], strides = [1, 1]} : vector<16x96xf32> to vector<16x32xf32>
    %206 = vector.extract_strided_slice %204 {offsets = [0, 32], sizes = [16, 32], strides = [1, 1]} : vector<16x96xf32> to vector<16x32xf32>
    %207 = vector.extract_strided_slice %204 {offsets = [0, 64], sizes = [16, 32], strides = [1, 1]} : vector<16x96xf32> to vector<16x32xf32>
    %c10 = arith.constant 10 : index
    %c0_79 = arith.constant 0 : index
    %208 = vector.load %arg11[%c10, %c0_79] : memref<18x32xf32, #tpu.memory_space<vmem>>, vector<1x32xf32>
    %c11 = arith.constant 11 : index
    %c0_80 = arith.constant 0 : index
    %209 = vector.load %arg11[%c11, %c0_80] : memref<18x32xf32, #tpu.memory_space<vmem>>, vector<1x32xf32>
    %210 = tpu.concatenate %205, %205, %205, %205 in 0 : vector<16x32xf32>, vector<16x32xf32>, vector<16x32xf32>, vector<16x32xf32> -> vector<64x32xf32>
    %211 = arith.mulf %210, %25 : vector<64x32xf32>
    %212 = arith.truncf %211 : vector<64x32xf32> to vector<64x32xbf16>
    %213 = arith.truncf %206 : vector<16x32xf32> to vector<16x32xbf16>
    %cst_81 = arith.constant dense<0.000000e+00> : vector<64x16xf32>
    %214 = tpu.matmul %212, %213, %cst_81 {dimension_numbers = #tpu.dot_dimension_numbers<[1], [1], [0], [0], [0, 0, 1, 0], [], []>} : vector<64x32xbf16>, vector<16x32xbf16>, vector<64x16xf32> -> vector<64x16xf32>
    %215 = arith.addf %214, %26 : vector<64x16xf32>
    %cst_82 = arith.constant dense<0xFF800000> : vector<64xf32>
    %216 = vector.multi_reduction <maximumf>, %215, %cst_82 [1] : vector<64x16xf32> to vector<64xf32>
    %217 = vector.shape_cast %216 : vector<64xf32> to vector<64x1xf32>
    %218 = vector.broadcast %217 : vector<64x1xf32> to vector<64x16xf32>
    %219 = arith.subf %215, %218 : vector<64x16xf32>
    %220 = math.exp %219 : vector<64x16xf32>
    %cst_83 = arith.constant dense<0.000000e+00> : vector<64xf32>
    %221 = vector.multi_reduction <add>, %220, %cst_83 [1] : vector<64x16xf32> to vector<64xf32>
    %222 = vector.shape_cast %221 : vector<64xf32> to vector<64x1xf32>
    %223 = tpu.reciprocal %222 {approx = true} : vector<64x1xf32> -> vector<64x1xf32>
    %224 = vector.broadcast %223 : vector<64x1xf32> to vector<64x16xf32>
    %225 = arith.mulf %220, %224 : vector<64x16xf32>
    %226 = arith.truncf %225 : vector<64x16xf32> to vector<64x16xbf16>
    %227 = arith.truncf %207 : vector<16x32xf32> to vector<16x32xbf16>
    %cst_84 = arith.constant dense<0.000000e+00> : vector<64x32xf32>
    %228 = tpu.matmul %226, %227, %cst_84 {dimension_numbers = #tpu.dot_dimension_numbers<[1], [0], [0], [1], [0, 0, 1, 1], [], []>} : vector<64x16xbf16>, vector<16x32xbf16>, vector<64x32xf32> -> vector<64x32xf32>
    %229 = arith.mulf %228, %25 : vector<64x32xf32>
    %230 = vector.extract_strided_slice %229 {offsets = [0, 0], sizes = [16, 32], strides = [1, 1]} : vector<64x32xf32> to vector<16x32xf32>
    %231 = vector.extract_strided_slice %229 {offsets = [16, 0], sizes = [16, 32], strides = [1, 1]} : vector<64x32xf32> to vector<16x32xf32>
    %232 = arith.addf %230, %231 : vector<16x32xf32>
    %233 = vector.extract_strided_slice %229 {offsets = [32, 0], sizes = [16, 32], strides = [1, 1]} : vector<64x32xf32> to vector<16x32xf32>
    %234 = arith.addf %232, %233 : vector<16x32xf32>
    %235 = vector.extract_strided_slice %229 {offsets = [48, 0], sizes = [16, 32], strides = [1, 1]} : vector<64x32xf32> to vector<16x32xf32>
    %236 = arith.addf %234, %235 : vector<16x32xf32>
    %237 = arith.addf %236, %197 : vector<16x32xf32>
    %cst_85 = arith.constant dense<0.000000e+00> : vector<16xf32>
    %238 = vector.multi_reduction <add>, %237, %cst_85 [1] : vector<16x32xf32> to vector<16xf32>
    %239 = vector.shape_cast %238 : vector<16xf32> to vector<16x1xf32>
    %cst_86 = arith.constant 3.200000e+01 : f32
    %240 = vector.broadcast %cst_86 : f32 to vector<16x1xf32>
    %241 = arith.divf %239, %240 : vector<16x1xf32>
    %242 = vector.broadcast %241 : vector<16x1xf32> to vector<16x32xf32>
    %243 = arith.subf %237, %242 : vector<16x32xf32>
    %244 = arith.mulf %243, %243 : vector<16x32xf32>
    %cst_87 = arith.constant dense<0.000000e+00> : vector<16xf32>
    %245 = vector.multi_reduction <add>, %244, %cst_87 [1] : vector<16x32xf32> to vector<16xf32>
    %246 = vector.shape_cast %245 : vector<16xf32> to vector<16x1xf32>
    %cst_88 = arith.constant 3.200000e+01 : f32
    %247 = vector.broadcast %cst_88 : f32 to vector<16x1xf32>
    %248 = arith.divf %246, %247 : vector<16x1xf32>
    %249 = vector.broadcast %241 : vector<16x1xf32> to vector<16x32xf32>
    %250 = arith.subf %237, %249 : vector<16x32xf32>
    %cst_89 = arith.constant 9.99999974E-6 : f32
    %251 = vector.broadcast %cst_89 : f32 to vector<16x1xf32>
    %252 = arith.addf %248, %251 : vector<16x1xf32>
    %253 = math.rsqrt %252 : vector<16x1xf32>
    %254 = vector.broadcast %253 : vector<16x1xf32> to vector<16x32xf32>
    %255 = arith.mulf %250, %254 : vector<16x32xf32>
    %256 = vector.broadcast %208 : vector<1x32xf32> to vector<16x32xf32>
    %257 = arith.mulf %255, %256 : vector<16x32xf32>
    %258 = vector.broadcast %209 : vector<1x32xf32> to vector<16x32xf32>
    %259 = arith.addf %257, %258 : vector<16x32xf32>
    %260 = arith.truncf %259 : vector<16x32xf32> to vector<16x32xbf16>
    %c1_90 = arith.constant 1 : index
    %c0_91 = arith.constant 0 : index
    %c0_92 = arith.constant 0 : index
    %261 = vector.load %arg6[%c1_90, %c0_91, %c0_92] : memref<2x32x32xbf16, #tpu.memory_space<vmem>>, vector<1x32x32xbf16>
    %262 = vector.shape_cast %261 : vector<1x32x32xbf16> to vector<32x32xbf16>
    %cst_93 = arith.constant dense<0.000000e+00> : vector<16x32xf32>
    %263 = tpu.matmul %260, %262, %cst_93 {dimension_numbers = #tpu.dot_dimension_numbers<[1], [0], [0], [1], [0, 0, 1, 1], [], []>} : vector<16x32xbf16>, vector<32x32xbf16>, vector<16x32xf32> -> vector<16x32xf32>
    %c12 = arith.constant 12 : index
    %c0_94 = arith.constant 0 : index
    %264 = vector.load %arg11[%c12, %c0_94] : memref<18x32xf32, #tpu.memory_space<vmem>>, vector<1x32xf32>
    %265 = vector.broadcast %264 : vector<1x32xf32> to vector<16x32xf32>
    %266 = arith.addf %263, %265 : vector<16x32xf32>
    %267 = vector.extract_strided_slice %33 {offsets = [0, 64], sizes = [16, 32], strides = [1, 1]} : vector<16x128xf32> to vector<16x32xf32>
    %268 = vector.extract_strided_slice %33 {offsets = [0, 96], sizes = [16, 32], strides = [1, 1]} : vector<16x128xf32> to vector<16x32xf32>
    %c13 = arith.constant 13 : index
    %c0_95 = arith.constant 0 : index
    %269 = vector.load %arg11[%c13, %c0_95] : memref<18x32xf32, #tpu.memory_space<vmem>>, vector<1x32xf32>
    %c14 = arith.constant 14 : index
    %c0_96 = arith.constant 0 : index
    %270 = vector.load %arg11[%c14, %c0_96] : memref<18x32xf32, #tpu.memory_space<vmem>>, vector<1x32xf32>
    %271 = tpu.concatenate %266, %266, %266, %266 in 0 : vector<16x32xf32>, vector<16x32xf32>, vector<16x32xf32>, vector<16x32xf32> -> vector<64x32xf32>
    %272 = arith.mulf %271, %25 : vector<64x32xf32>
    %273 = arith.truncf %272 : vector<64x32xf32> to vector<64x32xbf16>
    %274 = arith.truncf %267 : vector<16x32xf32> to vector<16x32xbf16>
    %cst_97 = arith.constant dense<0.000000e+00> : vector<64x16xf32>
    %275 = tpu.matmul %273, %274, %cst_97 {dimension_numbers = #tpu.dot_dimension_numbers<[1], [1], [0], [0], [0, 0, 1, 0], [], []>} : vector<64x32xbf16>, vector<16x32xbf16>, vector<64x16xf32> -> vector<64x16xf32>
    %276 = arith.addf %275, %27 : vector<64x16xf32>
    %cst_98 = arith.constant dense<0xFF800000> : vector<64xf32>
    %277 = vector.multi_reduction <maximumf>, %276, %cst_98 [1] : vector<64x16xf32> to vector<64xf32>
    %278 = vector.shape_cast %277 : vector<64xf32> to vector<64x1xf32>
    %279 = vector.broadcast %278 : vector<64x1xf32> to vector<64x16xf32>
    %280 = arith.subf %276, %279 : vector<64x16xf32>
    %281 = math.exp %280 : vector<64x16xf32>
    %cst_99 = arith.constant dense<0.000000e+00> : vector<64xf32>
    %282 = vector.multi_reduction <add>, %281, %cst_99 [1] : vector<64x16xf32> to vector<64xf32>
    %283 = vector.shape_cast %282 : vector<64xf32> to vector<64x1xf32>
    %284 = tpu.reciprocal %283 {approx = true} : vector<64x1xf32> -> vector<64x1xf32>
    %285 = vector.broadcast %284 : vector<64x1xf32> to vector<64x16xf32>
    %286 = arith.mulf %281, %285 : vector<64x16xf32>
    %287 = arith.truncf %286 : vector<64x16xf32> to vector<64x16xbf16>
    %288 = arith.truncf %268 : vector<16x32xf32> to vector<16x32xbf16>
    %cst_100 = arith.constant dense<0.000000e+00> : vector<64x32xf32>
    %289 = tpu.matmul %287, %288, %cst_100 {dimension_numbers = #tpu.dot_dimension_numbers<[1], [0], [0], [1], [0, 0, 1, 1], [], []>} : vector<64x16xbf16>, vector<16x32xbf16>, vector<64x32xf32> -> vector<64x32xf32>
    %290 = arith.mulf %289, %25 : vector<64x32xf32>
    %291 = vector.extract_strided_slice %290 {offsets = [0, 0], sizes = [16, 32], strides = [1, 1]} : vector<64x32xf32> to vector<16x32xf32>
    %292 = vector.extract_strided_slice %290 {offsets = [16, 0], sizes = [16, 32], strides = [1, 1]} : vector<64x32xf32> to vector<16x32xf32>
    %293 = arith.addf %291, %292 : vector<16x32xf32>
    %294 = vector.extract_strided_slice %290 {offsets = [32, 0], sizes = [16, 32], strides = [1, 1]} : vector<64x32xf32> to vector<16x32xf32>
    %295 = arith.addf %293, %294 : vector<16x32xf32>
    %296 = vector.extract_strided_slice %290 {offsets = [48, 0], sizes = [16, 32], strides = [1, 1]} : vector<64x32xf32> to vector<16x32xf32>
    %297 = arith.addf %295, %296 : vector<16x32xf32>
    %298 = arith.addf %297, %259 : vector<16x32xf32>
    %cst_101 = arith.constant dense<0.000000e+00> : vector<16xf32>
    %299 = vector.multi_reduction <add>, %298, %cst_101 [1] : vector<16x32xf32> to vector<16xf32>
    %300 = vector.shape_cast %299 : vector<16xf32> to vector<16x1xf32>
    %cst_102 = arith.constant 3.200000e+01 : f32
    %301 = vector.broadcast %cst_102 : f32 to vector<16x1xf32>
    %302 = arith.divf %300, %301 : vector<16x1xf32>
    %303 = vector.broadcast %302 : vector<16x1xf32> to vector<16x32xf32>
    %304 = arith.subf %298, %303 : vector<16x32xf32>
    %305 = arith.mulf %304, %304 : vector<16x32xf32>
    %cst_103 = arith.constant dense<0.000000e+00> : vector<16xf32>
    %306 = vector.multi_reduction <add>, %305, %cst_103 [1] : vector<16x32xf32> to vector<16xf32>
    %307 = vector.shape_cast %306 : vector<16xf32> to vector<16x1xf32>
    %cst_104 = arith.constant 3.200000e+01 : f32
    %308 = vector.broadcast %cst_104 : f32 to vector<16x1xf32>
    %309 = arith.divf %307, %308 : vector<16x1xf32>
    %310 = vector.broadcast %302 : vector<16x1xf32> to vector<16x32xf32>
    %311 = arith.subf %298, %310 : vector<16x32xf32>
    %cst_105 = arith.constant 9.99999974E-6 : f32
    %312 = vector.broadcast %cst_105 : f32 to vector<16x1xf32>
    %313 = arith.addf %309, %312 : vector<16x1xf32>
    %314 = math.rsqrt %313 : vector<16x1xf32>
    %315 = vector.broadcast %314 : vector<16x1xf32> to vector<16x32xf32>
    %316 = arith.mulf %311, %315 : vector<16x32xf32>
    %317 = vector.broadcast %269 : vector<1x32xf32> to vector<16x32xf32>
    %318 = arith.mulf %316, %317 : vector<16x32xf32>
    %319 = vector.broadcast %270 : vector<1x32xf32> to vector<16x32xf32>
    %320 = arith.addf %318, %319 : vector<16x32xf32>
    %321 = arith.truncf %320 : vector<16x32xf32> to vector<16x32xbf16>
    %c1_106 = arith.constant 1 : index
    %c0_107 = arith.constant 0 : index
    %c0_108 = arith.constant 0 : index
    %322 = vector.load %arg8[%c1_106, %c0_107, %c0_108] : memref<2x32x128xbf16, #tpu.memory_space<vmem>>, vector<1x32x128xbf16>
    %323 = vector.shape_cast %322 : vector<1x32x128xbf16> to vector<32x128xbf16>
    %cst_109 = arith.constant dense<0.000000e+00> : vector<16x128xf32>
    %324 = tpu.matmul %321, %323, %cst_109 {dimension_numbers = #tpu.dot_dimension_numbers<[1], [0], [0], [1], [0, 0, 1, 1], [], []>} : vector<16x32xbf16>, vector<32x128xbf16>, vector<16x128xf32> -> vector<16x128xf32>
    %c2_110 = arith.constant 2 : index
    %c0_111 = arith.constant 0 : index
    %325 = vector.load %arg13[%c2_110, %c0_111] : memref<4x128xf32, #tpu.memory_space<vmem>>, vector<1x128xf32>
    %326 = vector.broadcast %325 : vector<1x128xf32> to vector<16x128xf32>
    %327 = arith.addf %324, %326 : vector<16x128xf32>
    %cst_112 = arith.constant 0.000000e+00 : f32
    %328 = vector.broadcast %cst_112 : f32 to vector<16x128xf32>
    %329 = arith.maximumf %327, %328 : vector<16x128xf32>
    %330 = arith.truncf %329 : vector<16x128xf32> to vector<16x128xbf16>
    %c1_113 = arith.constant 1 : index
    %c0_114 = arith.constant 0 : index
    %c0_115 = arith.constant 0 : index
    %331 = vector.load %arg9[%c1_113, %c0_114, %c0_115] : memref<2x128x32xbf16, #tpu.memory_space<vmem>>, vector<1x128x32xbf16>
    %332 = vector.shape_cast %331 : vector<1x128x32xbf16> to vector<128x32xbf16>
    %cst_116 = arith.constant dense<0.000000e+00> : vector<16x32xf32>
    %333 = tpu.matmul %330, %332, %cst_116 {dimension_numbers = #tpu.dot_dimension_numbers<[1], [0], [0], [1], [0, 0, 1, 1], [], []>} : vector<16x128xbf16>, vector<128x32xbf16>, vector<16x32xf32> -> vector<16x32xf32>
    %c15 = arith.constant 15 : index
    %c0_117 = arith.constant 0 : index
    %334 = vector.load %arg11[%c15, %c0_117] : memref<18x32xf32, #tpu.memory_space<vmem>>, vector<1x32xf32>
    %335 = vector.broadcast %334 : vector<1x32xf32> to vector<16x32xf32>
    %336 = arith.addf %333, %335 : vector<16x32xf32>
    %337 = arith.addf %336, %320 : vector<16x32xf32>
    %c16 = arith.constant 16 : index
    %c0_118 = arith.constant 0 : index
    %338 = vector.load %arg11[%c16, %c0_118] : memref<18x32xf32, #tpu.memory_space<vmem>>, vector<1x32xf32>
    %c17 = arith.constant 17 : index
    %c0_119 = arith.constant 0 : index
    %339 = vector.load %arg11[%c17, %c0_119] : memref<18x32xf32, #tpu.memory_space<vmem>>, vector<1x32xf32>
    %cst_120 = arith.constant dense<0.000000e+00> : vector<16xf32>
    %340 = vector.multi_reduction <add>, %337, %cst_120 [1] : vector<16x32xf32> to vector<16xf32>
    %341 = vector.shape_cast %340 : vector<16xf32> to vector<16x1xf32>
    %cst_121 = arith.constant 3.200000e+01 : f32
    %342 = vector.broadcast %cst_121 : f32 to vector<16x1xf32>
    %343 = arith.divf %341, %342 : vector<16x1xf32>
    %344 = vector.broadcast %343 : vector<16x1xf32> to vector<16x32xf32>
    %345 = arith.subf %337, %344 : vector<16x32xf32>
    %346 = arith.mulf %345, %345 : vector<16x32xf32>
    %cst_122 = arith.constant dense<0.000000e+00> : vector<16xf32>
    %347 = vector.multi_reduction <add>, %346, %cst_122 [1] : vector<16x32xf32> to vector<16xf32>
    %348 = vector.shape_cast %347 : vector<16xf32> to vector<16x1xf32>
    %cst_123 = arith.constant 3.200000e+01 : f32
    %349 = vector.broadcast %cst_123 : f32 to vector<16x1xf32>
    %350 = arith.divf %348, %349 : vector<16x1xf32>
    %351 = vector.broadcast %343 : vector<16x1xf32> to vector<16x32xf32>
    %352 = arith.subf %337, %351 : vector<16x32xf32>
    %cst_124 = arith.constant 9.99999974E-6 : f32
    %353 = vector.broadcast %cst_124 : f32 to vector<16x1xf32>
    %354 = arith.addf %350, %353 : vector<16x1xf32>
    %355 = math.rsqrt %354 : vector<16x1xf32>
    %356 = vector.broadcast %355 : vector<16x1xf32> to vector<16x32xf32>
    %357 = arith.mulf %352, %356 : vector<16x32xf32>
    %358 = vector.broadcast %338 : vector<1x32xf32> to vector<16x32xf32>
    %359 = arith.mulf %357, %358 : vector<16x32xf32>
    %360 = vector.broadcast %339 : vector<1x32xf32> to vector<16x32xf32>
    %361 = arith.addf %359, %360 : vector<16x32xf32>
    %362 = arith.truncf %361 : vector<16x32xf32> to vector<16x32xbf16>
    %c0_125 = arith.constant 0 : index
    %c0_126 = arith.constant 0 : index
    %363 = vector.load %arg10[%c0_125, %c0_126] : memref<32x128xbf16, #tpu.memory_space<vmem>>, vector<32x128xbf16>
    %cst_127 = arith.constant dense<0.000000e+00> : vector<16x128xf32>
    %364 = tpu.matmul %362, %363, %cst_127 {dimension_numbers = #tpu.dot_dimension_numbers<[1], [0], [0], [1], [0, 0, 1, 1], [], []>} : vector<16x32xbf16>, vector<32x128xbf16>, vector<16x128xf32> -> vector<16x128xf32>
    %c3_128 = arith.constant 3 : index
    %c0_129 = arith.constant 0 : index
    %365 = vector.load %arg13[%c3_128, %c0_129] : memref<4x128xf32, #tpu.memory_space<vmem>>, vector<1x128xf32>
    %366 = vector.broadcast %365 : vector<1x128xf32> to vector<16x128xf32>
    %367 = arith.addf %364, %366 : vector<16x128xf32>
    %c0_130 = arith.constant 0 : index
    %c0_131 = arith.constant 0 : index
    %368 = vector.load %arg14[%c0_130, %c0_131] : memref<16x128xf32, #tpu.memory_space<vmem>>, vector<16x128xf32>
    tpu.vector_store %arg14[%c0_130, %c0_131], %367 {strides = array<i32>} : memref<16x128xf32, #tpu.memory_space<vmem>>, vector<16x128xf32>,
    return
  }
}

</mosaic_0001>

<llo_original>
// kernel: tpu_custom_call.1
$region0: #{tpu_custom_call.1}
  #allocation0 [shape = 'u32[]', space=smem, size = 0x4, offset = 0x4, fixed_abs, tag = 'smem constant byte address 0x4 - core index']
  #allocation1 [shape = 'u32[144,128]{1,0:T(1,128)}', space=vmem, size = 0x12000, scoped, tag = 'internal scratch']
  %s0 = inlined_call_operand.vmem [shape: f32[16,32], index: 0, kind: input, shape index: {}]
  %s1 = inlined_call_operand.vmem [shape: bf16[16,32], index: 1, kind: input, shape index: {}]
  %s2 = inlined_call_operand.vmem [shape: f32[64,16], index: 2, kind: input, shape index: {}]
  %s3 = inlined_call_operand.vmem [shape: f32[64,16], index: 3, kind: input, shape index: {}]
  %s4 = inlined_call_operand.vmem [shape: f32[64,32], index: 4, kind: input, shape index: {}]
  %s5 = inlined_call_operand.vmem [shape: bf16[2,32,96], index: 5, kind: input, shape index: {}]
  %s6 = inlined_call_operand.vmem [shape: bf16[2,32,32], index: 6, kind: input, shape index: {}]
  %s7 = inlined_call_operand.vmem [shape: bf16[32,128], index: 7, kind: input, shape index: {}]
  %s8 = inlined_call_operand.vmem [shape: bf16[2,32,128], index: 8, kind: input, shape index: {}]
  %s9 = inlined_call_operand.vmem [shape: bf16[2,128,32], index: 9, kind: input, shape index: {}]
  %s10 = inlined_call_operand.vmem [shape: bf16[32,128], index: 10, kind: input, shape index: {}]
  %s11 = inlined_call_operand.vmem [shape: f32[18,32], index: 11, kind: input, shape index: {}]
  %s12 = inlined_call_operand.vmem [shape: f32[2,96], index: 12, kind: input, shape index: {}]
  %s13 = inlined_call_operand.vmem [shape: f32[4,128], index: 13, kind: input, shape index: {}]
  %s14 = inlined_call_operand.hbm [shape: f32[16,128], index: 14, kind: output, shape index: {}]
  %s15 = sld [smem:[#allocation0]]
  $region66: #{tpu_custom_call.1} parent=0
    _
  %s17 = ssub.s32 1, %s15
  %s18 = scalar_select 0, %s17, %s15
  $region1: #{tpu_custom_call.1} parent=0
    #allocation2 [shape = 'u8[8192]{0}', space=vmem, size = 0x2000, scoped, tag = 'output window, operand 0, single buffered']
    #allocation3 [shape = 's32[1]{0}', space=sflag, size = 0x4, scoped, tag = 'scoped memory for tpu_custom_call.1']
    %19 = vsyncpa [#allocation3], 0
    // Predicated region
    $region2: #{tpu_custom_call.1} parent=1 // pred_check
      _
    $region3: #{tpu_custom_call.1} parent=1 // pred_check_branch
      %21 = sbr.rel (0) target = $region5
    $region4: #{tpu_custom_call.1} parent=1 // pred_region
      _
    $region5: #{tpu_custom_call.1} parent=1 // pred_fallthru
      _
    // Predicated region
    $region6: #{tpu_custom_call.1} parent=1 // pred_check
      _
    $region7: #{tpu_custom_call.1} parent=1 // pred_check_branch
      %23 = sbr.rel (0) target = $region9
    $region8: #{tpu_custom_call.1} parent=1 // pred_region
      _
    $region9: #{tpu_custom_call.1} parent=1 // pred_fallthru
      _
    // Predicated region
    $region10: #{tpu_custom_call.1} parent=1 // pred_check
      _
    $region11: #{tpu_custom_call.1} parent=1 // pred_check_branch
      %25 = sbr.rel (0) target = $region13
    $region12: #{tpu_custom_call.1} parent=1 // pred_region
      _
    $region13: #{tpu_custom_call.1} parent=1 // pred_fallthru
      _
    // Predicated region
    $region14: #{tpu_custom_call.1} parent=1 // pred_check
      _
    $region15: #{tpu_custom_call.1} parent=1 // pred_check_branch
      %27 = sbr.rel (0) target = $region17
    $region16: #{tpu_custom_call.1} parent=1 // pred_region
      _
    $region17: #{tpu_custom_call.1} parent=1 // pred_fallthru
      _
    // Predicated region
    $region18: #{tpu_custom_call.1} parent=1 // pred_check
      _
    $region19: #{tpu_custom_call.1} parent=1 // pred_check_branch
      %29 = sbr.rel (0) target = $region21
    $region20: #{tpu_custom_call.1} parent=1 // pred_region
      _
    $region21: #{tpu_custom_call.1} parent=1 // pred_fallthru
      _
    // Predicated region
    $region22: #{tpu_custom_call.1} parent=1 // pred_check
      _
    $region23: #{tpu_custom_call.1} parent=1 // pred_check_branch
      %31 = sbr.rel (0) target = $region25
    $region24: #{tpu_custom_call.1} parent=1 // pred_region
      _
    $region25: #{tpu_custom_call.1} parent=1 // pred_fallthru
      _
    // Predicated region
    $region26: #{tpu_custom_call.1} parent=1 // pred_check
      _
    $region27: #{tpu_custom_call.1} parent=1 // pred_check_branch
      %33 = sbr.rel (0) target = $region29
    $region28: #{tpu_custom_call.1} parent=1 // pred_region
      _
    $region29: #{tpu_custom_call.1} parent=1 // pred_fallthru
      _
    // Predicated region
    $region30: #{tpu_custom_call.1} parent=1 // pred_check
      _
    $region31: #{tpu_custom_call.1} parent=1 // pred_check_branch
      %35 = sbr.rel (0) target = $region33
    $region32: #{tpu_custom_call.1} parent=1 // pred_region
      _
    $region33: #{tpu_custom_call.1} parent=1 // pred_fallthru
      _
    // Predicated region
    $region34: #{tpu_custom_call.1} parent=1 // pred_check
      _
    $region35: #{tpu_custom_call.1} parent=1 // pred_check_branch
      %37 = sbr.rel (0) target = $region37
    $region36: #{tpu_custom_call.1} parent=1 // pred_region
      _
    $region37: #{tpu_custom_call.1} parent=1 // pred_fallthru
      _
    // Predicated region
    $region38: #{tpu_custom_call.1} parent=1 // pred_check
      _
    $region39: #{tpu_custom_call.1} parent=1 // pred_check_branch
      %39 = sbr.rel (0) target = $region41
    $region40: #{tpu_custom_call.1} parent=1 // pred_region
      _
    $region41: #{tpu_custom_call.1} parent=1 // pred_fallthru
      _
    // Predicated region
    $region42: #{tpu_custom_call.1} parent=1 // pred_check
      _
    $region43: #{tpu_custom_call.1} parent=1 // pred_check_branch
      %41 = sbr.rel (0) target = $region45
    $region44: #{tpu_custom_call.1} parent=1 // pred_region
      _
    $region45: #{tpu_custom_call.1} parent=1 // pred_fallthru
      _
    // Predicated region
    $region46: #{tpu_custom_call.1} parent=1 // pred_check
      _
    $region47: #{tpu_custom_call.1} parent=1 // pred_check_branch
      %43 = sbr.rel (0) target = $region49
    $region48: #{tpu_custom_call.1} parent=1 // pred_region
      _
    $region49: #{tpu_custom_call.1} parent=1 // pred_fallthru
      _
    // Predicated region
    $region50: #{tpu_custom_call.1} parent=1 // pred_check
      _
    $region51: #{tpu_custom_call.1} parent=1 // pred_check_branch
      %45 = sbr.rel (0) target = $region53
    $region52: #{tpu_custom_call.1} parent=1 // pred_region
      _
    $region53: #{tpu_custom_call.1} parent=1 // pred_fallthru
      _
    // Predicated region
    $region54: #{tpu_custom_call.1} parent=1 // pred_check
      _
    $region55: #{tpu_custom_call.1} parent=1 // pred_check_branch
      %47 = sbr.rel (0) target = $region57
    $region56: #{tpu_custom_call.1} parent=1 // pred_region
      _
    $region57: #{tpu_custom_call.1} parent=1 // pred_fallthru
      _
    %v49 = vld [vmem:[%s0] sm:$0xff]
    %v50 = vld [vmem:[%s0 + $0x8] sm:$0xff]
    %v51 = vld [vmem:[%s11] sm:$0x1]
    %v52 = vld [vmem:[%s11 + $0x1] sm:$0x1]
    %vm53 = vcmask 261120
    %v54 = vsel %vm53, %v49, 0.0
    %55 = vadd.xlane.f32.xlu0 %v54
    %v56 = vpop.xlane.xlu0 %55
    %v57 = vsel %vm53, %v50, 0.0
    %58 = vadd.xlane.f32.xlu0 %v57
    %v59 = vpop.xlane.xlu0 %58
    %v60 = vrcp.pop 32.0
    %v61 = vmul.f32 %v56, %v60
    %v62 = vmul.f32 %v59, %v60
    %v63 = vsub.f32 %v49, %v61
    %v64 = vsub.f32 %v50, %v62
    %v65 = vmul.f32 %v63, %v63
    %v66 = vmul.f32 %v64, %v64
    %v67 = vsel %vm53, %v65, 0.0
    %68 = vadd.xlane.f32.xlu0 %v67
    %v69 = vpop.xlane.xlu0 %68
    %v70 = vsel %vm53, %v66, 0.0
    %71 = vadd.xlane.f32.xlu0 %v70
    %v72 = vpop.xlane.xlu0 %71
    %v73 = vmul.f32 %v69, %v60
    %v74 = vmul.f32 %v72, %v60
    %v75 = vadd.f32 %v73, 1e-05
    %v76 = vadd.f32 %v74, 1e-05
    %v77 = vrsqrt.pop %v75
    %v78 = vrsqrt.pop %v76
    %v79 = vmul.f32 %v63, %v77
    %v80 = vmul.f32 %v64, %v78
    %v81 = vlaneseq
    %v82 = vshrl.u32 %v81, 7
    %v83 = vsub.s32 0, %v82
    %v84 = vrot.slane %v51, %v83
    %v85 = vmul.f32 %v79, %v84
    %v86 = vmul.f32 %v80, %v84
    %v87 = vlaneseq
    %v88 = vshrl.u32 %v87, 7
    %v89 = vsub.s32 0, %v88
    %v90 = vrot.slane %v52, %v89
    %v91 = vadd.f32 %v85, %v90
    %v92 = vadd.f32 %v86, %v90
    %v93 = vld [vmem:[%s4] sm:$0xff]
    %v94 = vld [vmem:[%s4 + $0x8] sm:$0xff]
    %v95 = vld [vmem:[%s4 + $0x10] sm:$0xff]
    %v96 = vld [vmem:[%s4 + $0x18] sm:$0xff]
    %v97 = vld [vmem:[%s4 + $0x20] sm:$0xff]
    %v98 = vld [vmem:[%s4 + $0x28] sm:$0xff]
    %v99 = vld [vmem:[%s4 + $0x30] sm:$0xff]
    %v100 = vld [vmem:[%s4 + $0x38] sm:$0xff]
    %v101 = vld [vmem:[%s2] sm:$0xff]
    %v102 = vld [vmem:[%s2 + $0x8] sm:$0xff]
    %v103 = vld [vmem:[%s2 + $0x10] sm:$0xff]
    %v104 = vld [vmem:[%s2 + $0x18] sm:$0xff]
    %v105 = vld [vmem:[%s2 + $0x20] sm:$0xff]
    %v106 = vld [vmem:[%s2 + $0x28] sm:$0xff]
    %v107 = vld [vmem:[%s2 + $0x30] sm:$0xff]
    %v108 = vld [vmem:[%s2 + $0x38] sm:$0xff]
    %v109 = vld [vmem:[%s3] sm:$0xff]
    %v110 = vld [vmem:[%s3 + $0x8] sm:$0xff]
    %v111 = vld [vmem:[%s3 + $0x10] sm:$0xff]
    %v112 = vld [vmem:[%s3 + $0x18] sm:$0xff]
    %v113 = vld [vmem:[%s3 + $0x20] sm:$0xff]
    %v114 = vld [vmem:[%s3 + $0x28] sm:$0xff]
    %v115 = vld [vmem:[%s3 + $0x30] sm:$0xff]
    %v116 = vld [vmem:[%s3 + $0x38] sm:$0xff]
    %v117 = vld [vmem:[%s1] sm:$0xf]
    %v118 = vld [vmem:[%s1 + $0x4] sm:$0xf]
    %v119 = vld [vmem:[%s7] sm:$0xf]
    %v120 = vld [vmem:[%s7 + $0x4] sm:$0xf]
    %v121 = vld [vmem:[%s7 + $0x8] sm:$0xf]
    %v122 = vld [vmem:[%s7 + $0xc] sm:$0xf]
    %v123 = vld [vmem:[%s13] sm:$0x1]
    %v124 = vlaneseq
    %v125 = vshrl.u32 %v124, 7
    %v126 = vsub.s32 0, %v125
    %v127 = vrot.slane %v123, %v126
    %v130 = vunpack.c.l.b16 %v117
    %v131 = vunpack.c.l.b16 %v118
    %v132 = vpack.c.b16 %v131, %v130
    %v137 = vunpack.c.l.b16 %v119
    %v138 = vunpack.c.l.b16 %v120
    %v139 = vunpack.c.l.b16 %v121
    %v140 = vunpack.c.l.b16 %v122
    %v141 = vpack.c.b16 %v138, %v137
    %v142 = vpack.c.b16 %v140, %v139
    %v146 = vsel %vm53, %v132, 0
    %148 = vmatprep.subr.bf16.mxu0 0
    %149 = vmatpush1.bf16.msra.mxu0 %v141
    %150 = vmatprep.subr.bf16.mxu0 0
    %151 = vmatpush1.bf16.msra.mxu0 %v142
    %152 = vmatprep.subr.bf16.mxu0 0
    %153 = vmatpush1.bf16.msra.mxu0 0
    %154 = vmatprep.subr.bf16.mxu0 0
    %155 = vmatpush1.bf16.msra.mxu0 0
    %156 = vmatprep.subr.bf16.mxu0 0
    %157 = vmatpush1.bf16.msra.mxu0 0
    %158 = vmatprep.subr.bf16.mxu0 0
    %159 = vmatpush1.bf16.msra.mxu0 0
    %160 = vmatprep.subr.bf16.mxu0 0
    %161 = vmatpush1.bf16.msra.mxu0 0
    %162 = vmatprep.subr.bf16.mxu0 0
    %163 = vmatpush1.bf16.msra.mxu0 0
    %164 = vmatprep.subr.bf16.mxu0 0
    %165 = vmatpush1.bf16.msra.mxu0 0
    %166 = vmatprep.subr.bf16.mxu0 0
    %167 = vmatpush1.bf16.msra.mxu0 0
    %168 = vmatprep.subr.bf16.mxu0 0
    %169 = vmatpush1.bf16.msra.mxu0 0
    %170 = vmatprep.subr.bf16.mxu0 0
    %171 = vmatpush1.bf16.msra.mxu0 0
    %172 = vmatprep.subr.bf16.mxu0 0
    %173 = vmatpush1.bf16.msra.mxu0 0
    %174 = vmatprep.subr.bf16.mxu0 0
    %175 = vmatpush1.bf16.msra.mxu0 0
    %176 = vmatprep.subr.bf16.mxu0 0
    %177 = vmatpush1.bf16.msra.mxu0 0
    %178 = vmatprep.subr.bf16.mxu0 0
    %179 = vmatpush1.bf16.msra.mxu0 0
    %180 = vmatprep.mubr.bf16.mxu0 0
    %181 = vmatmul.mubr.bf16.gmra.mrb[0].mxu0 %v146
    %v182 = vpop.f32.mrb[0].mxu0
    %v183 = vadd.f32 %v127, %v182
    %v184 = vpop.f32.mrb[0].mxu0
    %v185 = vpop.f32.mrb[0].mxu0
    %v186 = vadd.f32 %v127, %v185
    %v187 = vpop.f32.mrb[0].mxu0
    %188 = vdwg.mxu0
    %v189 = vpack.c.bf16 %v92, %v91
    %v190 = vld [vmem:[%s5] sm:$0xf]
    %v191 = vld [vmem:[%s5 + $0x4] sm:$0xf]
    %v192 = vld [vmem:[%s5 + $0x8] sm:$0xf]
    %v193 = vld [vmem:[%s5 + $0xc] sm:$0xf]
    %v194 = vld [vmem:[%s12] sm:$0x1]
    %v195 = vlaneseq
    %v196 = vshrl.u32 %v195, 7
    %v197 = vsub.s32 0, %v196
    %v198 = vrot.slane %v194, %v197
    %v203 = vunpack.c.l.b16 %v190
    %v204 = vunpack.c.l.b16 %v191
    %v205 = vunpack.c.l.b16 %v192
    %v206 = vunpack.c.l.b16 %v193
    %v207 = vpack.c.b16 %v204, %v203
    %v208 = vpack.c.b16 %v206, %v205
    %v212 = vsel %vm53, %v189, 0
    %214 = vmatprep.subr.bf16.mxu0 0
    %215 = vmatpush1.bf16.msra.mxu0 %v207
    %216 = vmatprep.subr.bf16.mxu0 0
    %217 = vmatpush1.bf16.msra.mxu0 %v208
    %218 = vmatprep.subr.bf16.mxu0 0
    %219 = vmatpush1.bf16.msra.mxu0 0
    %220 = vmatprep.subr.bf16.mxu0 0
    %221 = vmatpush1.bf16.msra.mxu0 0
    %222 = vmatprep.subr.bf16.mxu0 0
    %223 = vmatpush1.bf16.msra.mxu0 0
    %224 = vmatprep.subr.bf16.mxu0 0
    %225 = vmatpush1.bf16.msra.mxu0 0
    %226 = vmatprep.subr.bf16.mxu0 0
    %227 = vmatpush1.bf16.msra.mxu0 0
    %228 = vmatprep.subr.bf16.mxu0 0
    %229 = vmatpush1.bf16.msra.mxu0 0
    %230 = vmatprep.subr.bf16.mxu0 0
    %231 = vmatpush1.bf16.msra.mxu0 0
    %232 = vmatprep.subr.bf16.mxu0 0
    %233 = vmatpush1.bf16.msra.mxu0 0
    %234 = vmatprep.subr.bf16.mxu0 0
    %235 = vmatpush1.bf16.msra.mxu0 0
    %236 = vmatprep.subr.bf16.mxu0 0
    %237 = vmatpush1.bf16.msra.mxu0 0
    %238 = vmatprep.subr.bf16.mxu0 0
    %239 = vmatpush1.bf16.msra.mxu0 0
    %240 = vmatprep.subr.bf16.mxu0 0
    %241 = vmatpush1.bf16.msra.mxu0 0
    %242 = vmatprep.subr.bf16.mxu0 0
    %243 = vmatpush1.bf16.msra.mxu0 0
    %244 = vmatprep.subr.bf16.mxu0 0
    %245 = vmatpush1.bf16.msra.mxu0 0
    %246 = vmatprep.mubr.bf16.mxu0 0
    %247 = vmatmul.mubr.bf16.gmra.mrb[0].mxu0 %v212
    %v248 = vpop.f32.mrb[0].mxu0
    %v249 = vadd.f32 %v198, %v248
    %v250 = vpop.f32.mrb[0].mxu0
    %v251 = vpop.f32.mrb[0].mxu0
    %v252 = vadd.f32 %v198, %v251
    %v253 = vpop.f32.mrb[0].mxu0
    %254 = vdwg.mxu0
    %v255 = vld [vmem:[%s11 + $0x2] sm:$0x1]
    %v256 = vld [vmem:[%s11 + $0x3] sm:$0x1]
    %v257 = vmul.f32 %v249, %v93
    %v258 = vmul.f32 %v252, %v94
    %v259 = vmul.f32 %v249, %v95
    %v260 = vmul.f32 %v252, %v96
    %v261 = vmul.f32 %v249, %v97
    %v262 = vmul.f32 %v252, %v98
    %v263 = vmul.f32 %v249, %v99
    %v264 = vmul.f32 %v252, %v100
    %v265 = vpack.c.bf16 %v258, %v257
    %v266 = vpack.c.bf16 %v260, %v259
    %v267 = vpack.c.bf16 %v262, %v261
    %v268 = vpack.c.bf16 %v264, %v263
    %v269 = vpack.c.bf16 %v252, %v249
    %271 = vrot.lane.b32.xlu0 %v269, 96
    %v272 = vpop.permute.xlu0 %271
    %v274 = vsel %vm53, %v265, 0
    %v277 = vsel %vm53, %v266, 0
    %v280 = vsel %vm53, %v267, 0
    %v283 = vsel %vm53, %v268, 0
    %v286 = vsel %vm53, %v272, 0
    %288 = vmatprep.subr.bf16.mxu0 0
    %289 = vmatpush1.bf16.xpose.msra.mxu0 %v286
    %290 = vmatprep.subr.bf16.mxu0 0
    %291 = vmatpush1.bf16.xpose.msra.mxu0 0
    %292 = vmatprep.subr.bf16.mxu0 0
    %293 = vmatpush1.bf16.xpose.msra.mxu0 0
    %294 = vmatprep.subr.bf16.mxu0 0
    %295 = vmatpush1.bf16.xpose.msra.mxu0 0
    %296 = vmatprep.subr.bf16.mxu0 0
    %297 = vmatpush1.bf16.xpose.msra.mxu0 0
    %298 = vmatprep.subr.bf16.mxu0 0
    %299 = vmatpush1.bf16.xpose.msra.mxu0 0
    %300 = vmatprep.subr.bf16.mxu0 0
    %301 = vmatpush1.bf16.xpose.msra.mxu0 0
    %302 = vmatprep.subr.bf16.mxu0 0
    %303 = vmatpush1.bf16.xpose.msra.mxu0 0
    %304 = vmatprep.subr.bf16.mxu0 0
    %305 = vmatpush1.bf16.xpose.msra.mxu0 0
    %306 = vmatprep.subr.bf16.mxu0 0
    %307 = vmatpush1.bf16.xpose.msra.mxu0 0
    %308 = vmatprep.subr.bf16.mxu0 0
    %309 = vmatpush1.bf16.xpose.msra.mxu0 0
    %310 = vmatprep.subr.bf16.mxu0 0
    %311 = vmatpush1.bf16.xpose.msra.mxu0 0
    %312 = vmatprep.subr.bf16.mxu0 0
    %313 = vmatpush1.bf16.xpose.msra.mxu0 0
    %314 = vmatprep.subr.bf16.mxu0 0
    %315 = vmatpush1.bf16.xpose.msra.mxu0 0
    %316 = vmatprep.subr.bf16.mxu0 0
    %317 = vmatpush1.bf16.xpose.msra.mxu0 0
    %318 = vmatprep.subr.bf16.mxu0 0
    %319 = vmatpush1.bf16.xpose.msra.mxu0 0
    %320 = vmatprep.mubr.bf16.mxu0 0
    %321 = vmatmul.mubr.bf16.gmra.mrb[0].mxu0 %v274
    %v322 = vpop.f32.mrb[0].mxu0
    %v323 = vadd.f32 %v101, %v322
    %v324 = vpop.f32.mrb[0].mxu0
    %v325 = vpop.f32.mrb[0].mxu0
    %v326 = vadd.f32 %v102, %v325
    %v327 = vpop.f32.mrb[0].mxu0
    %328 = vmatprep.mubr.bf16.mxu0 0
    %329 = vmatmul.mubr.bf16.gmra.mrb[0].mxu0 %v277
    %v330 = vpop.f32.mrb[0].mxu0
    %v331 = vadd.f32 %v103, %v330
    %v332 = vpop.f32.mrb[0].mxu0
    %v333 = vpop.f32.mrb[0].mxu0
    %v334 = vadd.f32 %v104, %v333
    %v335 = vpop.f32.mrb[0].mxu0
    %336 = vmatprep.mubr.bf16.mxu0 0
    %337 = vmatmul.mubr.bf16.gmra.mrb[0].mxu0 %v280
    %v338 = vpop.f32.mrb[0].mxu0
    %v339 = vadd.f32 %v105, %v338
    %v340 = vpop.f32.mrb[0].mxu0
    %v341 = vpop.f32.mrb[0].mxu0
    %v342 = vadd.f32 %v106, %v341
    %v343 = vpop.f32.mrb[0].mxu0
    %344 = vmatprep.mubr.bf16.mxu0 0
    %345 = vmatmul.mubr.bf16.gmra.mrb[0].mxu0 %v283
    %v346 = vpop.f32.mrb[0].mxu0
    %v347 = vadd.f32 %v107, %v346
    %v348 = vpop.f32.mrb[0].mxu0
    %v349 = vpop.f32.mrb[0].mxu0
    %v350 = vadd.f32 %v108, %v349
    %v351 = vpop.f32.mrb[0].mxu0
    %352 = vdwg.mxu0
    %vm353 = vcmask 130048
    %v354 = vsel %vm353, %v323, -inf
    %355 = vmax.xlane.f32.xlu0 %v354
    %v356 = vpop.xlane.xlu0 %355
    %v357 = vsel %vm353, %v326, -inf
    %358 = vmax.xlane.f32.xlu0 %v357
    %v359 = vpop.xlane.xlu0 %358
    %v360 = vsel %vm353, %v331, -inf
    %361 = vmax.xlane.f32.xlu0 %v360
    %v362 = vpop.xlane.xlu0 %361
    %v363 = vsel %vm353, %v334, -inf
    %364 = vmax.xlane.f32.xlu0 %v363
    %v365 = vpop.xlane.xlu0 %364
    %v366 = vsel %vm353, %v339, -inf
    %367 = vmax.xlane.f32.xlu0 %v366
    %v368 = vpop.xlane.xlu0 %367
    %v369 = vsel %vm353, %v342, -inf
    %370 = vmax.xlane.f32.xlu0 %v369
    %v371 = vpop.xlane.xlu0 %370
    %v372 = vsel %vm353, %v347, -inf
    %373 = vmax.xlane.f32.xlu0 %v372
    %v374 = vpop.xlane.xlu0 %373
    %v375 = vsel %vm353, %v350, -inf
    %376 = vmax.xlane.f32.xlu0 %v375
    %v377 = vpop.xlane.xlu0 %376
    %v378 = vsub.f32 %v323, %v356
    %v379 = vsub.f32 %v326, %v359
    %v380 = vsub.f32 %v331, %v362
    %v381 = vsub.f32 %v334, %v365
    %v382 = vsub.f32 %v339, %v368
    %v383 = vsub.f32 %v342, %v371
    %v384 = vsub.f32 %v347, %v374
    %v385 = vsub.f32 %v350, %v377
    %v386 = vmul.f32 %v378, 1.442695
    %v387 = vpow.pop %v386
    %v388 = vmul.f32 %v379, 1.442695
    %v389 = vpow.pop %v388
    %v390 = vmul.f32 %v380, 1.442695
    %v391 = vpow.pop %v390
    %v392 = vmul.f32 %v381, 1.442695
    %v393 = vpow.pop %v392
    %v394 = vmul.f32 %v382, 1.442695
    %v395 = vpow.pop %v394
    %v396 = vmul.f32 %v383, 1.442695
    %v397 = vpow.pop %v396
    %v398 = vmul.f32 %v384, 1.442695
    %v399 = vpow.pop %v398
    %v400 = vmul.f32 %v385, 1.442695
    %v401 = vpow.pop %v400
    %v402 = vsel %vm353, %v387, 0.0
    %403 = vadd.xlane.f32.xlu0 %v402
    %v404 = vpop.xlane.xlu0 %403
    %v405 = vsel %vm353, %v389, 0.0
    %406 = vadd.xlane.f32.xlu0 %v405
    %v407 = vpop.xlane.xlu0 %406
    %v408 = vsel %vm353, %v391, 0.0
    %409 = vadd.xlane.f32.xlu0 %v408
    %v410 = vpop.xlane.xlu0 %409
    %v411 = vsel %vm353, %v393, 0.0
    %412 = vadd.xlane.f32.xlu0 %v411
    %v413 = vpop.xlane.xlu0 %412
    %v414 = vsel %vm353, %v395, 0.0
    %415 = vadd.xlane.f32.xlu0 %v414
    %v416 = vpop.xlane.xlu0 %415
    %v417 = vsel %vm353, %v397, 0.0
    %418 = vadd.xlane.f32.xlu0 %v417
    %v419 = vpop.xlane.xlu0 %418
    %v420 = vsel %vm353, %v399, 0.0
    %421 = vadd.xlane.f32.xlu0 %v420
    %v422 = vpop.xlane.xlu0 %421
    %v423 = vsel %vm353, %v401, 0.0
    %424 = vadd.xlane.f32.xlu0 %v423
    %v425 = vpop.xlane.xlu0 %424
    %v426 = vrcp.pop %v404
    %v427 = vrcp.pop %v407
    %v428 = vrcp.pop %v410
    %v429 = vrcp.pop %v413
    %v430 = vrcp.pop %v416
    %v431 = vrcp.pop %v419
    %v432 = vrcp.pop %v422
    %v433 = vrcp.pop %v425
    %v434 = vmul.f32 %v387, %v426
    %v435 = vmul.f32 %v389, %v427
    %v436 = vmul.f32 %v391, %v428
    %v437 = vmul.f32 %v393, %v429
    %v438 = vmul.f32 %v395, %v430
    %v439 = vmul.f32 %v397, %v431
    %v440 = vmul.f32 %v399, %v432
    %v441 = vmul.f32 %v401, %v433
    %v442 = vpack.c.bf16 %v435, %v434
    %v443 = vpack.c.bf16 %v437, %v436
    %v444 = vpack.c.bf16 %v439, %v438
    %v445 = vpack.c.bf16 %v441, %v440
    %446 = vrot.lane.b32.xlu0 %v269, 64
    %v447 = vpop.permute.xlu0 %446
    %v450 = vsel %vm353, %v442, 0
    %v453 = vsel %vm353, %v443, 0
    %v456 = vsel %vm353, %v444, 0
    %v459 = vsel %vm353, %v445, 0
    %461 = vmatprep.subr.bf16.mxu0 0
    %462 = vmatpush1.bf16.msra.mxu0 %v447
    %463 = vmatprep.subr.bf16.mxu0 0
    %464 = vmatpush1.bf16.msra.mxu0 0
    %465 = vmatprep.subr.bf16.mxu0 0
    %466 = vmatpush1.bf16.msra.mxu0 0
    %467 = vmatprep.subr.bf16.mxu0 0
    %468 = vmatpush1.bf16.msra.mxu0 0
    %469 = vmatprep.subr.bf16.mxu0 0
    %470 = vmatpush1.bf16.msra.mxu0 0
    %471 = vmatprep.subr.bf16.mxu0 0
    %472 = vmatpush1.bf16.msra.mxu0 0
    %473 = vmatprep.subr.bf16.mxu0 0
    %474 = vmatpush1.bf16.msra.mxu0 0
    %475 = vmatprep.subr.bf16.mxu0 0
    %476 = vmatpush1.bf16.msra.mxu0 0
    %477 = vmatprep.subr.bf16.mxu0 0
    %478 = vmatpush1.bf16.msra.mxu0 0
    %479 = vmatprep.subr.bf16.mxu0 0
    %480 = vmatpush1.bf16.msra.mxu0 0
    %481 = vmatprep.subr.bf16.mxu0 0
    %482 = vmatpush1.bf16.msra.mxu0 0
    %483 = vmatprep.subr.bf16.mxu0 0
    %484 = vmatpush1.bf16.msra.mxu0 0
    %485 = vmatprep.subr.bf16.mxu0 0
    %486 = vmatpush1.bf16.msra.mxu0 0
    %487 = vmatprep.subr.bf16.mxu0 0
    %488 = vmatpush1.bf16.msra.mxu0 0
    %489 = vmatprep.subr.bf16.mxu0 0
    %490 = vmatpush1.bf16.msra.mxu0 0
    %491 = vmatprep.subr.bf16.mxu0 0
    %492 = vmatpush1.bf16.msra.mxu0 0
    %493 = vmatprep.mubr.bf16.mxu0 0
    %494 = vmatmul.mubr.bf16.gmra.mrb[0].mxu0 %v450
    %v495 = vpop.f32.mrb[0].mxu0
    %v496 = vadd.f32 0.0, %v495
    %v497 = vpop.f32.mrb[0].mxu0
    %v498 = vpop.f32.mrb[0].mxu0
    %v499 = vadd.f32 0.0, %v498
    %v500 = vpop.f32.mrb[0].mxu0
    %501 = vmatprep.mubr.bf16.mxu0 0
    %502 = vmatmul.mubr.bf16.gmra.mrb[0].mxu0 %v453
    %v503 = vpop.f32.mrb[0].mxu0
    %v504 = vadd.f32 0.0, %v503
    %v505 = vpop.f32.mrb[0].mxu0
    %v506 = vpop.f32.mrb[0].mxu0
    %v507 = vadd.f32 0.0, %v506
    %v508 = vpop.f32.mrb[0].mxu0
    %509 = vmatprep.mubr.bf16.mxu0 0
    %510 = vmatmul.mubr.bf16.gmra.mrb[0].mxu0 %v456
    %v511 = vpop.f32.mrb[0].mxu0
    %v512 = vadd.f32 0.0, %v511
    %v513 = vpop.f32.mrb[0].mxu0
    %v514 = vpop.f32.mrb[0].mxu0
    %v515 = vadd.f32 0.0, %v514
    %v516 = vpop.f32.mrb[0].mxu0
    %517 = vmatprep.mubr.bf16.mxu0 0
    %518 = vmatmul.mubr.bf16.gmra.mrb[0].mxu0 %v459
    %v519 = vpop.f32.mrb[0].mxu0
    %v520 = vadd.f32 0.0, %v519
    %v521 = vpop.f32.mrb[0].mxu0
    %v522 = vpop.f32.mrb[0].mxu0
    %v523 = vadd.f32 0.0, %v522
    %v524 = vpop.f32.mrb[0].mxu0
    %525 = vdwg.mxu0
    %v526 = vmul.f32 %v496, %v93
    %v527 = vmul.f32 %v499, %v94
    %v528 = vmul.f32 %v504, %v95
    %v529 = vmul.f32 %v507, %v96
    %v530 = vmul.f32 %v512, %v97
    %v531 = vmul.f32 %v515, %v98
    %v532 = vmul.f32 %v520, %v99
    %v533 = vmul.f32 %v523, %v100
    %v534 = vadd.f32 %v526, %v528
    %v535 = vadd.f32 %v527, %v529
    %v536 = vadd.f32 %v534, %v530
    %v537 = vadd.f32 %v535, %v531
    %v538 = vadd.f32 %v536, %v532
    %v539 = vadd.f32 %v537, %v533
    %v540 = vadd.f32 %v538, %v91
    %v541 = vadd.f32 %v539, %v92
    %v542 = vsel %vm53, %v540, 0.0
    %543 = vadd.xlane.f32.xlu0 %v542
    %v544 = vpop.xlane.xlu0 %543
    %v545 = vsel %vm53, %v541, 0.0
    %546 = vadd.xlane.f32.xlu0 %v545
    %v547 = vpop.xlane.xlu0 %546
    %v548 = vmul.f32 %v544, %v60
    %v549 = vmul.f32 %v547, %v60
    %v550 = vsub.f32 %v540, %v548
    %v551 = vsub.f32 %v541, %v549
    %v552 = vmul.f32 %v550, %v550
    %v553 = vmul.f32 %v551, %v551
    %v554 = vsel %vm53, %v552, 0.0
    %555 = vadd.xlane.f32.xlu0 %v554
    %v556 = vpop.xlane.xlu0 %555
    %v557 = vsel %vm53, %v553, 0.0
    %558 = vadd.xlane.f32.xlu0 %v557
    %v559 = vpop.xlane.xlu0 %558
    %v560 = vmul.f32 %v556, %v60
    %v561 = vmul.f32 %v559, %v60
    %v562 = vadd.f32 %v560, 1e-05
    %v563 = vadd.f32 %v561, 1e-05
    %v564 = vrsqrt.pop %v562
    %v565 = vrsqrt.pop %v563
    %v566 = vmul.f32 %v550, %v564
    %v567 = vmul.f32 %v551, %v565
    %v568 = vlaneseq
    %v569 = vshrl.u32 %v568, 7
    %v570 = vsub.s32 0, %v569
    %v571 = vrot.slane %v255, %v570
    %v572 = vmul.f32 %v566, %v571
    %v573 = vmul.f32 %v567, %v571
    %v574 = vlaneseq
    %v575 = vshrl.u32 %v574, 7
    %v576 = vsub.s32 0, %v575
    %v577 = vrot.slane %v256, %v576
    %v578 = vadd.f32 %v572, %v577
    %v579 = vadd.f32 %v573, %v577
    %v580 = vpack.c.bf16 %v579, %v578
    %v581 = vld [vmem:[%s6] sm:$0xf]
    %v582 = vld [vmem:[%s6 + $0x4] sm:$0xf]
    %v583 = vld [vmem:[%s6 + $0x8] sm:$0xf]
    %v584 = vld [vmem:[%s6 + $0xc] sm:$0xf]
    %v585 = vld [vmem:[%s11 + $0x4] sm:$0x1]
    %v586 = vlaneseq
    %v587 = vshrl.u32 %v586, 7
    %v588 = vsub.s32 0, %v587
    %v589 = vrot.slane %v585, %v588
    %v594 = vunpack.c.l.b16 %v581
    %v595 = vunpack.c.l.b16 %v582
    %v596 = vunpack.c.l.b16 %v583
    %v597 = vunpack.c.l.b16 %v584
    %v598 = vpack.c.b16 %v595, %v594
    %v599 = vpack.c.b16 %v597, %v596
    %v603 = vsel %vm53, %v580, 0
    %605 = vmatprep.subr.bf16.mxu0 0
    %606 = vmatpush1.bf16.msra.mxu0 %v598
    %607 = vmatprep.subr.bf16.mxu0 0
    %608 = vmatpush1.bf16.msra.mxu0 %v599
    %609 = vmatprep.subr.bf16.mxu0 0
    %610 = vmatpush1.bf16.msra.mxu0 0
    %611 = vmatprep.subr.bf16.mxu0 0
    %612 = vmatpush1.bf16.msra.mxu0 0
    %613 = vmatprep.subr.bf16.mxu0 0
    %614 = vmatpush1.bf16.msra.mxu0 0
    %615 = vmatprep.subr.bf16.mxu0 0
    %616 = vmatpush1.bf16.msra.mxu0 0
    %617 = vmatprep.subr.bf16.mxu0 0
    %618 = vmatpush1.bf16.msra.mxu0 0
    %619 = vmatprep.subr.bf16.mxu0 0
    %620 = vmatpush1.bf16.msra.mxu0 0
    %621 = vmatprep.subr.bf16.mxu0 0
    %622 = vmatpush1.bf16.msra.mxu0 0
    %623 = vmatprep.subr.bf16.mxu0 0
    %624 = vmatpush1.bf16.msra.mxu0 0
    %625 = vmatprep.subr.bf16.mxu0 0
    %626 = vmatpush1.bf16.msra.mxu0 0
    %627 = vmatprep.subr.bf16.mxu0 0
    %628 = vmatpush1.bf16.msra.mxu0 0
    %629 = vmatprep.subr.bf16.mxu0 0
    %630 = vmatpush1.bf16.msra.mxu0 0
    %631 = vmatprep.subr.bf16.mxu0 0
    %632 = vmatpush1.bf16.msra.mxu0 0
    %633 = vmatprep.subr.bf16.mxu0 0
    %634 = vmatpush1.bf16.msra.mxu0 0
    %635 = vmatprep.subr.bf16.mxu0 0
    %636 = vmatpush1.bf16.msra.mxu0 0
    %637 = vmatprep.mubr.bf16.mxu0 0
    %638 = vmatmul.mubr.bf16.gmra.mrb[0].mxu0 %v603
    %v639 = vpop.f32.mrb[0].mxu0
    %v640 = vadd.f32 %v589, %v639
    %v641 = vpop.f32.mrb[0].mxu0
    %v642 = vpop.f32.mrb[0].mxu0
    %v643 = vadd.f32 %v589, %v642
    %v644 = vpop.f32.mrb[0].mxu0
    %645 = vdwg.mxu0
    %v646 = vld [vmem:[%s11 + $0x5] sm:$0x1]
    %v647 = vld [vmem:[%s11 + $0x6] sm:$0x1]
    %v648 = vmul.f32 %v640, %v93
    %v649 = vmul.f32 %v643, %v94
    %v650 = vmul.f32 %v640, %v95
    %v651 = vmul.f32 %v643, %v96
    %v652 = vmul.f32 %v640, %v97
    %v653 = vmul.f32 %v643, %v98
    %v654 = vmul.f32 %v640, %v99
    %v655 = vmul.f32 %v643, %v100
    %v656 = vpack.c.bf16 %v649, %v648
    %v657 = vpack.c.bf16 %v651, %v650
    %v658 = vpack.c.bf16 %v653, %v652
    %v659 = vpack.c.bf16 %v655, %v654
    %v660 = vpack.c.bf16 %v186, %v183
    %v662 = vsel %vm53, %v656, 0
    %v665 = vsel %vm53, %v657, 0
    %v668 = vsel %vm53, %v658, 0
    %v671 = vsel %vm53, %v659, 0
    %v674 = vsel %vm53, %v660, 0
    %676 = vmatprep.subr.bf16.mxu0 0
    %677 = vmatpush1.bf16.xpose.msra.mxu0 %v674
    %678 = vmatprep.subr.bf16.mxu0 0
    %679 = vmatpush1.bf16.xpose.msra.mxu0 0
    %680 = vmatprep.subr.bf16.mxu0 0
    %681 = vmatpush1.bf16.xpose.msra.mxu0 0
    %682 = vmatprep.subr.bf16.mxu0 0
    %683 = vmatpush1.bf16.xpose.msra.mxu0 0
    %684 = vmatprep.subr.bf16.mxu0 0
    %685 = vmatpush1.bf16.xpose.msra.mxu0 0
    %686 = vmatprep.subr.bf16.mxu0 0
    %687 = vmatpush1.bf16.xpose.msra.mxu0 0
    %688 = vmatprep.subr.bf16.mxu0 0
    %689 = vmatpush1.bf16.xpose.msra.mxu0 0
    %690 = vmatprep.subr.bf16.mxu0 0
    %691 = vmatpush1.bf16.xpose.msra.mxu0 0
    %692 = vmatprep.subr.bf16.mxu0 0
    %693 = vmatpush1.bf16.xpose.msra.mxu0 0
    %694 = vmatprep.subr.bf16.mxu0 0
    %695 = vmatpush1.bf16.xpose.msra.mxu0 0
    %696 = vmatprep.subr.bf16.mxu0 0
    %697 = vmatpush1.bf16.xpose.msra.mxu0 0
    %698 = vmatprep.subr.bf16.mxu0 0
    %699 = vmatpush1.bf16.xpose.msra.mxu0 0
    %700 = vmatprep.subr.bf16.mxu0 0
    %701 = vmatpush1.bf16.xpose.msra.mxu0 0
    %702 = vmatprep.subr.bf16.mxu0 0
    %703 = vmatpush1.bf16.xpose.msra.mxu0 0
    %704 = vmatprep.subr.bf16.mxu0 0
    %705 = vmatpush1.bf16.xpose.msra.mxu0 0
    %706 = vmatprep.subr.bf16.mxu0 0
    %707 = vmatpush1.bf16.xpose.msra.mxu0 0
    %708 = vmatprep.mubr.bf16.mxu0 0
    %709 = vmatmul.mubr.bf16.gmra.mrb[0].mxu0 %v662
    %v710 = vpop.f32.mrb[0].mxu0
    %v711 = vadd.f32 %v109, %v710
    %v712 = vpop.f32.mrb[0].mxu0
    %v713 = vpop.f32.mrb[0].mxu0
    %v714 = vadd.f32 %v110, %v713
    %v715 = vpop.f32.mrb[0].mxu0
    %716 = vmatprep.mubr.bf16.mxu0 0
    %717 = vmatmul.mubr.bf16.gmra.mrb[0].mxu0 %v665
    %v718 = vpop.f32.mrb[0].mxu0
    %v719 = vadd.f32 %v111, %v718
    %v720 = vpop.f32.mrb[0].mxu0
    %v721 = vpop.f32.mrb[0].mxu0
    %v722 = vadd.f32 %v112, %v721
    %v723 = vpop.f32.mrb[0].mxu0
    %724 = vmatprep.mubr.bf16.mxu0 0
    %725 = vmatmul.mubr.bf16.gmra.mrb[0].mxu0 %v668
    %v726 = vpop.f32.mrb[0].mxu0
    %v727 = vadd.f32 %v113, %v726
    %v728 = vpop.f32.mrb[0].mxu0
    %v729 = vpop.f32.mrb[0].mxu0
    %v730 = vadd.f32 %v114, %v729
    %v731 = vpop.f32.mrb[0].mxu0
    %732 = vmatprep.mubr.bf16.mxu0 0
    %733 = vmatmul.mubr.bf16.gmra.mrb[0].mxu0 %v671
    %v734 = vpop.f32.mrb[0].mxu0
    %v735 = vadd.f32 %v115, %v734
    %v736 = vpop.f32.mrb[0].mxu0
    %v737 = vpop.f32.mrb[0].mxu0
    %v738 = vadd.f32 %v116, %v737
    %v739 = vpop.f32.mrb[0].mxu0
    %740 = vdwg.mxu0
    %v741 = vsel %vm353, %v711, -inf
    %742 = vmax.xlane.f32.xlu0 %v741
    %v743 = vpop.xlane.xlu0 %742
    %v744 = vsel %vm353, %v714, -inf
    %745 = vmax.xlane.f32.xlu0 %v744
    %v746 = vpop.xlane.xlu0 %745
    %v747 = vsel %vm353, %v719, -inf
    %748 = vmax.xlane.f32.xlu0 %v747
    %v749 = vpop.xlane.xlu0 %748
    %v750 = vsel %vm353, %v722, -inf
    %751 = vmax.xlane.f32.xlu0 %v750
    %v752 = vpop.xlane.xlu0 %751
    %v753 = vsel %vm353, %v727, -inf
    %754 = vmax.xlane.f32.xlu0 %v753
    %v755 = vpop.xlane.xlu0 %754
    %v756 = vsel %vm353, %v730, -inf
    %757 = vmax.xlane.f32.xlu0 %v756
    %v758 = vpop.xlane.xlu0 %757
    %v759 = vsel %vm353, %v735, -inf
    %760 = vmax.xlane.f32.xlu0 %v759
    %v761 = vpop.xlane.xlu0 %760
    %v762 = vsel %vm353, %v738, -inf
    %763 = vmax.xlane.f32.xlu0 %v762
    %v764 = vpop.xlane.xlu0 %763
    %v765 = vsub.f32 %v711, %v743
    %v766 = vsub.f32 %v714, %v746
    %v767 = vsub.f32 %v719, %v749
    %v768 = vsub.f32 %v722, %v752
    %v769 = vsub.f32 %v727, %v755
    %v770 = vsub.f32 %v730, %v758
    %v771 = vsub.f32 %v735, %v761
    %v772 = vsub.f32 %v738, %v764
    %v773 = vmul.f32 %v765, 1.442695
    %v774 = vpow.pop %v773
    %v775 = vmul.f32 %v766, 1.442695
    %v776 = vpow.pop %v775
    %v777 = vmul.f32 %v767, 1.442695
    %v778 = vpow.pop %v777
    %v779 = vmul.f32 %v768, 1.442695
    %v780 = vpow.pop %v779
    %v781 = vmul.f32 %v769, 1.442695
    %v782 = vpow.pop %v781
    %v783 = vmul.f32 %v770, 1.442695
    %v784 = vpow.pop %v783
    %v785 = vmul.f32 %v771, 1.442695
    %v786 = vpow.pop %v785
    %v787 = vmul.f32 %v772, 1.442695
    %v788 = vpow.pop %v787
    %v789 = vsel %vm353, %v774, 0.0
    %790 = vadd.xlane.f32.xlu0 %v789
    %v791 = vpop.xlane.xlu0 %790
    %v792 = vsel %vm353, %v776, 0.0
    %793 = vadd.xlane.f32.xlu0 %v792
    %v794 = vpop.xlane.xlu0 %793
    %v795 = vsel %vm353, %v778, 0.0
    %796 = vadd.xlane.f32.xlu0 %v795
    %v797 = vpop.xlane.xlu0 %796
    %v798 = vsel %vm353, %v780, 0.0
    %799 = vadd.xlane.f32.xlu0 %v798
    %v800 = vpop.xlane.xlu0 %799
    %v801 = vsel %vm353, %v782, 0.0
    %802 = vadd.xlane.f32.xlu0 %v801
    %v803 = vpop.xlane.xlu0 %802
    %v804 = vsel %vm353, %v784, 0.0
    %805 = vadd.xlane.f32.xlu0 %v804
    %v806 = vpop.xlane.xlu0 %805
    %v807 = vsel %vm353, %v786, 0.0
    %808 = vadd.xlane.f32.xlu0 %v807
    %v809 = vpop.xlane.xlu0 %808
    %v810 = vsel %vm353, %v788, 0.0
    %811 = vadd.xlane.f32.xlu0 %v810
    %v812 = vpop.xlane.xlu0 %811
    %v813 = vrcp.pop %v791
    %v814 = vrcp.pop %v794
    %v815 = vrcp.pop %v797
    %v816 = vrcp.pop %v800
    %v817 = vrcp.pop %v803
    %v818 = vrcp.pop %v806
    %v819 = vrcp.pop %v809
    %v820 = vrcp.pop %v812
    %v821 = vmul.f32 %v774, %v813
    %v822 = vmul.f32 %v776, %v814
    %v823 = vmul.f32 %v778, %v815
    %v824 = vmul.f32 %v780, %v816
    %v825 = vmul.f32 %v782, %v817
    %v826 = vmul.f32 %v784, %v818
    %v827 = vmul.f32 %v786, %v819
    %v828 = vmul.f32 %v788, %v820
    %v829 = vpack.c.bf16 %v822, %v821
    %v830 = vpack.c.bf16 %v824, %v823
    %v831 = vpack.c.bf16 %v826, %v825
    %v832 = vpack.c.bf16 %v828, %v827
    %834 = vrot.lane.b32.xlu0 %v660, 96
    %v835 = vpop.permute.xlu0 %834
    %v838 = vsel %vm353, %v829, 0
    %v841 = vsel %vm353, %v830, 0
    %v844 = vsel %vm353, %v831, 0
    %v847 = vsel %vm353, %v832, 0
    %849 = vmatprep.subr.bf16.mxu0 0
    %850 = vmatpush1.bf16.msra.mxu0 %v835
    %851 = vmatprep.subr.bf16.mxu0 0
    %852 = vmatpush1.bf16.msra.mxu0 0
    %853 = vmatprep.subr.bf16.mxu0 0
    %854 = vmatpush1.bf16.msra.mxu0 0
    %855 = vmatprep.subr.bf16.mxu0 0
    %856 = vmatpush1.bf16.msra.mxu0 0
    %857 = vmatprep.subr.bf16.mxu0 0
    %858 = vmatpush1.bf16.msra.mxu0 0
    %859 = vmatprep.subr.bf16.mxu0 0
    %860 = vmatpush1.bf16.msra.mxu0 0
    %861 = vmatprep.subr.bf16.mxu0 0
    %862 = vmatpush1.bf16.msra.mxu0 0
    %863 = vmatprep.subr.bf16.mxu0 0
    %864 = vmatpush1.bf16.msra.mxu0 0
    %865 = vmatprep.subr.bf16.mxu0 0
    %866 = vmatpush1.bf16.msra.mxu0 0
    %867 = vmatprep.subr.bf16.mxu0 0
    %868 = vmatpush1.bf16.msra.mxu0 0
    %869 = vmatprep.subr.bf16.mxu0 0
    %870 = vmatpush1.bf16.msra.mxu0 0
    %871 = vmatprep.subr.bf16.mxu0 0
    %872 = vmatpush1.bf16.msra.mxu0 0
    %873 = vmatprep.subr.bf16.mxu0 0
    %874 = vmatpush1.bf16.msra.mxu0 0
    %875 = vmatprep.subr.bf16.mxu0 0
    %876 = vmatpush1.bf16.msra.mxu0 0
    %877 = vmatprep.subr.bf16.mxu0 0
    %878 = vmatpush1.bf16.msra.mxu0 0
    %879 = vmatprep.subr.bf16.mxu0 0
    %880 = vmatpush1.bf16.msra.mxu0 0
    %881 = vmatprep.mubr.bf16.mxu0 0
    %882 = vmatmul.mubr.bf16.gmra.mrb[0].mxu0 %v838
    %v883 = vpop.f32.mrb[0].mxu0
    %v884 = vadd.f32 0.0, %v883
    %v885 = vpop.f32.mrb[0].mxu0
    %v886 = vpop.f32.mrb[0].mxu0
    %v887 = vadd.f32 0.0, %v886
    %v888 = vpop.f32.mrb[0].mxu0
    %889 = vmatprep.mubr.bf16.mxu0 0
    %890 = vmatmul.mubr.bf16.gmra.mrb[0].mxu0 %v841
    %v891 = vpop.f32.mrb[0].mxu0
    %v892 = vadd.f32 0.0, %v891
    %v893 = vpop.f32.mrb[0].mxu0
    %v894 = vpop.f32.mrb[0].mxu0
    %v895 = vadd.f32 0.0, %v894
    %v896 = vpop.f32.mrb[0].mxu0
    %897 = vmatprep.mubr.bf16.mxu0 0
    %898 = vmatmul.mubr.bf16.gmra.mrb[0].mxu0 %v844
    %v899 = vpop.f32.mrb[0].mxu0
    %v900 = vadd.f32 0.0, %v899
    %v901 = vpop.f32.mrb[0].mxu0
    %v902 = vpop.f32.mrb[0].mxu0
    %v903 = vadd.f32 0.0, %v902
    %v904 = vpop.f32.mrb[0].mxu0
    %905 = vmatprep.mubr.bf16.mxu0 0
    %906 = vmatmul.mubr.bf16.gmra.mrb[0].mxu0 %v847
    %v907 = vpop.f32.mrb[0].mxu0
    %v908 = vadd.f32 0.0, %v907
    %v909 = vpop.f32.mrb[0].mxu0
    %v910 = vpop.f32.mrb[0].mxu0
    %v911 = vadd.f32 0.0, %v910
    %v912 = vpop.f32.mrb[0].mxu0
    %913 = vdwg.mxu0
    %v914 = vmul.f32 %v884, %v93
    %v915 = vmul.f32 %v887, %v94
    %v916 = vmul.f32 %v892, %v95
    %v917 = vmul.f32 %v895, %v96
    %v918 = vmul.f32 %v900, %v97
    %v919 = vmul.f32 %v903, %v98
    %v920 = vmul.f32 %v908, %v99
    %v921 = vmul.f32 %v911, %v100
    %v922 = vadd.f32 %v914, %v916
    %v923 = vadd.f32 %v915, %v917
    %v924 = vadd.f32 %v922, %v918
    %v925 = vadd.f32 %v923, %v919
    %v926 = vadd.f32 %v924, %v920
    %v927 = vadd.f32 %v925, %v921
    %v928 = vadd.f32 %v926, %v578
    %v929 = vadd.f32 %v927, %v579
    %v930 = vsel %vm53, %v928, 0.0
    %931 = vadd.xlane.f32.xlu0 %v930
    %v932 = vpop.xlane.xlu0 %931
    %v933 = vsel %vm53, %v929, 0.0
    %934 = vadd.xlane.f32.xlu0 %v933
    %v935 = vpop.xlane.xlu0 %934
    %v936 = vmul.f32 %v932, %v60
    %v937 = vmul.f32 %v935, %v60
    %v938 = vsub.f32 %v928, %v936
    %v939 = vsub.f32 %v929, %v937
    %v940 = vmul.f32 %v938, %v938
    %v941 = vmul.f32 %v939, %v939
    %v942 = vsel %vm53, %v940, 0.0
    %943 = vadd.xlane.f32.xlu0 %v942
    %v944 = vpop.xlane.xlu0 %943
    %v945 = vsel %vm53, %v941, 0.0
    %946 = vadd.xlane.f32.xlu0 %v945
    %v947 = vpop.xlane.xlu0 %946
    %v948 = vmul.f32 %v944, %v60
    %v949 = vmul.f32 %v947, %v60
    %v950 = vadd.f32 %v948, 1e-05
    %v951 = vadd.f32 %v949, 1e-05
    %v952 = vrsqrt.pop %v950
    %v953 = vrsqrt.pop %v951
    %v954 = vmul.f32 %v938, %v952
    %v955 = vmul.f32 %v939, %v953
    %v956 = vlaneseq
    %v957 = vshrl.u32 %v956, 7
    %v958 = vsub.s32 0, %v957
    %v959 = vrot.slane %v646, %v958
    %v960 = vmul.f32 %v954, %v959
    %v961 = vmul.f32 %v955, %v959
    %v962 = vlaneseq
    %v963 = vshrl.u32 %v962, 7
    %v964 = vsub.s32 0, %v963
    %v965 = vrot.slane %v647, %v964
    %v966 = vadd.f32 %v960, %v965
    %v967 = vadd.f32 %v961, %v965
    %v968 = vpack.c.bf16 %v967, %v966
    %v969 = vld [vmem:[%s8] sm:$0xf]
    %v970 = vld [vmem:[%s8 + $0x4] sm:$0xf]
    %v971 = vld [vmem:[%s8 + $0x8] sm:$0xf]
    %v972 = vld [vmem:[%s8 + $0xc] sm:$0xf]
    %v973 = vld [vmem:[%s13 + $0x1] sm:$0x1]
    %v974 = vlaneseq
    %v975 = vshrl.u32 %v974, 7
    %v976 = vsub.s32 0, %v975
    %v977 = vrot.slane %v973, %v976
    %v982 = vunpack.c.l.b16 %v969
    %v983 = vunpack.c.l.b16 %v970
    %v984 = vunpack.c.l.b16 %v971
    %v985 = vunpack.c.l.b16 %v972
    %v986 = vpack.c.b16 %v983, %v982
    %v987 = vpack.c.b16 %v985, %v984
    %v991 = vsel %vm53, %v968, 0
    %993 = vmatprep.subr.bf16.mxu0 0
    %994 = vmatpush1.bf16.msra.mxu0 %v986
    %995 = vmatprep.subr.bf16.mxu0 0
    %996 = vmatpush1.bf16.msra.mxu0 %v987
    %997 = vmatprep.subr.bf16.mxu0 0
    %998 = vmatpush1.bf16.msra.mxu0 0
    %999 = vmatprep.subr.bf16.mxu0 0
    %1000 = vmatpush1.bf16.msra.mxu0 0
    %1001 = vmatprep.subr.bf16.mxu0 0
    %1002 = vmatpush1.bf16.msra.mxu0 0
    %1003 = vmatprep.subr.bf16.mxu0 0
    %1004 = vmatpush1.bf16.msra.mxu0 0
    %1005 = vmatprep.subr.bf16.mxu0 0
    %1006 = vmatpush1.bf16.msra.mxu0 0
    %1007 = vmatprep.subr.bf16.mxu0 0
    %1008 = vmatpush1.bf16.msra.mxu0 0
    %1009 = vmatprep.subr.bf16.mxu0 0
    %1010 = vmatpush1.bf16.msra.mxu0 0
    %1011 = vmatprep.subr.bf16.mxu0 0
    %1012 = vmatpush1.bf16.msra.mxu0 0
    %1013 = vmatprep.subr.bf16.mxu0 0
    %1014 = vmatpush1.bf16.msra.mxu0 0
    %1015 = vmatprep.subr.bf16.mxu0 0
    %1016 = vmatpush1.bf16.msra.mxu0 0
    %1017 = vmatprep.subr.bf16.mxu0 0
    %1018 = vmatpush1.bf16.msra.mxu0 0
    %1019 = vmatprep.subr.bf16.mxu0 0
    %1020 = vmatpush1.bf16.msra.mxu0 0
    %1021 = vmatprep.subr.bf16.mxu0 0
    %1022 = vmatpush1.bf16.msra.mxu0 0
    %1023 = vmatprep.subr.bf16.mxu0 0
    %1024 = vmatpush1.bf16.msra.mxu0 0
    %1025 = vmatprep.mubr.bf16.mxu0 0
    %1026 = vmatmul.mubr.bf16.gmra.mrb[0].mxu0 %v991
    %v1027 = vpop.f32.mrb[0].mxu0
    %v1028 = vadd.f32 %v977, %v1027
    %v1029 = vpop.f32.mrb[0].mxu0
    %v1030 = vpop.f32.mrb[0].mxu0
    %v1031 = vadd.f32 %v977, %v1030
    %v1032 = vpop.f32.mrb[0].mxu0
    %1033 = vdwg.mxu0
    %v1034 = vmax.f32 %v1028, 0.0
    %v1035 = vmax.f32 %v1031, 0.0
    %v1036 = vpack.c.bf16 %v1035, %v1034
    %v1037 = vld [vmem:[%s9] sm:$0xf]
    %v1038 = vld [vmem:[%s9 + $0x4] sm:$0xf]
    %v1039 = vld [vmem:[%s9 + $0x8] sm:$0xf]
    %v1040 = vld [vmem:[%s9 + $0xc] sm:$0xf]
    %v1041 = vld [vmem:[%s9 + $0x10] sm:$0xf]
    %v1042 = vld [vmem:[%s9 + $0x14] sm:$0xf]
    %v1043 = vld [vmem:[%s9 + $0x18] sm:$0xf]
    %v1044 = vld [vmem:[%s9 + $0x1c] sm:$0xf]
    %v1045 = vld [vmem:[%s9 + $0x20] sm:$0xf]
    %v1046 = vld [vmem:[%s9 + $0x24] sm:$0xf]
    %v1047 = vld [vmem:[%s9 + $0x28] sm:$0xf]
    %v1048 = vld [vmem:[%s9 + $0x2c] sm:$0xf]
    %v1049 = vld [vmem:[%s9 + $0x30] sm:$0xf]
    %v1050 = vld [vmem:[%s9 + $0x34] sm:$0xf]
    %v1051 = vld [vmem:[%s9 + $0x38] sm:$0xf]
    %v1052 = vld [vmem:[%s9 + $0x3c] sm:$0xf]
    %v1053 = vld [vmem:[%s11 + $0x7] sm:$0x1]
    %v1054 = vlaneseq
    %v1055 = vshrl.u32 %v1054, 7
    %v1056 = vsub.s32 0, %v1055
    %v1057 = vrot.slane %v1053, %v1056
    %v1074 = vunpack.c.l.b16 %v1037
    %v1075 = vunpack.c.l.b16 %v1038
    %v1076 = vunpack.c.l.b16 %v1039
    %v1077 = vunpack.c.l.b16 %v1040
    %v1078 = vunpack.c.l.b16 %v1041
    %v1079 = vunpack.c.l.b16 %v1042
    %v1080 = vunpack.c.l.b16 %v1043
    %v1081 = vunpack.c.l.b16 %v1044
    %v1082 = vunpack.c.l.b16 %v1045
    %v1083 = vunpack.c.l.b16 %v1046
    %v1084 = vunpack.c.l.b16 %v1047
    %v1085 = vunpack.c.l.b16 %v1048
    %v1086 = vunpack.c.l.b16 %v1049
    %v1087 = vunpack.c.l.b16 %v1050
    %v1088 = vunpack.c.l.b16 %v1051
    %v1089 = vunpack.c.l.b16 %v1052
    %v1090 = vpack.c.b16 %v1075, %v1074
    %v1091 = vpack.c.b16 %v1077, %v1076
    %v1092 = vpack.c.b16 %v1079, %v1078
    %v1093 = vpack.c.b16 %v1081, %v1080
    %v1094 = vpack.c.b16 %v1083, %v1082
    %v1095 = vpack.c.b16 %v1085, %v1084
    %v1096 = vpack.c.b16 %v1087, %v1086
    %v1097 = vpack.c.b16 %v1089, %v1088
    %1106 = vmatprep.subr.bf16.mxu0 0
    %1107 = vmatpush1.bf16.msra.mxu0 %v1090
    %1108 = vmatprep.subr.bf16.mxu0 0
    %1109 = vmatpush1.bf16.msra.mxu0 %v1091
    %1110 = vmatprep.subr.bf16.mxu0 0
    %1111 = vmatpush1.bf16.msra.mxu0 %v1092
    %1112 = vmatprep.subr.bf16.mxu0 0
    %1113 = vmatpush1.bf16.msra.mxu0 %v1093
    %1114 = vmatprep.subr.bf16.mxu0 0
    %1115 = vmatpush1.bf16.msra.mxu0 %v1094
    %1116 = vmatprep.subr.bf16.mxu0 0
    %1117 = vmatpush1.bf16.msra.mxu0 %v1095
    %1118 = vmatprep.subr.bf16.mxu0 0
    %1119 = vmatpush1.bf16.msra.mxu0 %v1096
    %1120 = vmatprep.subr.bf16.mxu0 0
    %1121 = vmatpush1.bf16.msra.mxu0 %v1097
    %1122 = vmatprep.subr.bf16.mxu0 0
    %1123 = vmatpush1.bf16.msra.mxu0 0
    %1124 = vmatprep.subr.bf16.mxu0 0
    %1125 = vmatpush1.bf16.msra.mxu0 0
    %1126 = vmatprep.subr.bf16.mxu0 0
    %1127 = vmatpush1.bf16.msra.mxu0 0
    %1128 = vmatprep.subr.bf16.mxu0 0
    %1129 = vmatpush1.bf16.msra.mxu0 0
    %1130 = vmatprep.subr.bf16.mxu0 0
    %1131 = vmatpush1.bf16.msra.mxu0 0
    %1132 = vmatprep.subr.bf16.mxu0 0
    %1133 = vmatpush1.bf16.msra.mxu0 0
    %1134 = vmatprep.subr.bf16.mxu0 0
    %1135 = vmatpush1.bf16.msra.mxu0 0
    %1136 = vmatprep.subr.bf16.mxu0 0
    %1137 = vmatpush1.bf16.msra.mxu0 0
    %1138 = vmatprep.mubr.bf16.mxu0 0
    %1139 = vmatmul.mubr.bf16.gmra.mrb[0].mxu0 %v1036
    %v1140 = vpop.f32.mrb[0].mxu0
    %v1141 = vadd.f32 %v1057, %v1140
    %v1142 = vpop.f32.mrb[0].mxu0
    %v1143 = vpop.f32.mrb[0].mxu0
    %v1144 = vadd.f32 %v1057, %v1143
    %v1145 = vpop.f32.mrb[0].mxu0
    %1146 = vdwg.mxu0
    %v1147 = vadd.f32 %v1141, %v966
    %v1148 = vadd.f32 %v1144, %v967
    %v1149 = vld [vmem:[%s11 + $0x8] sm:$0x1]
    %v1150 = vld [vmem:[%s11 + $0x9] sm:$0x1]
    %v1151 = vsel %vm53, %v1147, 0.0
    %1152 = vadd.xlane.f32.xlu0 %v1151
    %v1153 = vpop.xlane.xlu0 %1152
    %v1154 = vsel %vm53, %v1148, 0.0
    %1155 = vadd.xlane.f32.xlu0 %v1154
    %v1156 = vpop.xlane.xlu0 %1155
    %v1157 = vmul.f32 %v1153, %v60
    %v1158 = vmul.f32 %v1156, %v60
    %v1159 = vsub.f32 %v1147, %v1157
    %v1160 = vsub.f32 %v1148, %v1158
    %v1161 = vmul.f32 %v1159, %v1159
    %v1162 = vmul.f32 %v1160, %v1160
    %v1163 = vsel %vm53, %v1161, 0.0
    %1164 = vadd.xlane.f32.xlu0 %v1163
    %v1165 = vpop.xlane.xlu0 %1164
    %v1166 = vsel %vm53, %v1162, 0.0
    %1167 = vadd.xlane.f32.xlu0 %v1166
    %v1168 = vpop.xlane.xlu0 %1167
    %v1169 = vmul.f32 %v1165, %v60
    %v1170 = vmul.f32 %v1168, %v60
    %v1171 = vadd.f32 %v1169, 1e-05
    %v1172 = vadd.f32 %v1170, 1e-05
    %v1173 = vrsqrt.pop %v1171
    %v1174 = vrsqrt.pop %v1172
    %v1175 = vmul.f32 %v1159, %v1173
    %v1176 = vmul.f32 %v1160, %v1174
    %v1177 = vlaneseq
    %v1178 = vshrl.u32 %v1177, 7
    %v1179 = vsub.s32 0, %v1178
    %v1180 = vrot.slane %v1149, %v1179
    %v1181 = vmul.f32 %v1175, %v1180
    %v1182 = vmul.f32 %v1176, %v1180
    %v1183 = vlaneseq
    %v1184 = vshrl.u32 %v1183, 7
    %v1185 = vsub.s32 0, %v1184
    %v1186 = vrot.slane %v1150, %v1185
    %v1187 = vadd.f32 %v1181, %v1186
    %v1188 = vadd.f32 %v1182, %v1186
    %v1189 = vpack.c.bf16 %v1188, %v1187
    %s1190 = scalar_lea.vmem %s5, 16
    %v1191 = vld [vmem:[%s1190] sm:$0xf]
    %v1192 = vld [vmem:[%s1190 + $0x4] sm:$0xf]
    %v1193 = vld [vmem:[%s1190 + $0x8] sm:$0xf]
    %v1194 = vld [vmem:[%s1190 + $0xc] sm:$0xf]
    %v1195 = vld [vmem:[%s12 + $0x1] sm:$0x1]
    %v1196 = vlaneseq
    %v1197 = vshrl.u32 %v1196, 7
    %v1198 = vsub.s32 0, %v1197
    %v1199 = vrot.slane %v1195, %v1198
    %v1204 = vunpack.c.l.b16 %v1191
    %v1205 = vunpack.c.l.b16 %v1192
    %v1206 = vunpack.c.l.b16 %v1193
    %v1207 = vunpack.c.l.b16 %v1194
    %v1208 = vpack.c.b16 %v1205, %v1204
    %v1209 = vpack.c.b16 %v1207, %v1206
    %v1213 = vsel %vm53, %v1189, 0
    %1215 = vmatprep.subr.bf16.mxu0 0
    %1216 = vmatpush1.bf16.msra.mxu0 %v1208
    %1217 = vmatprep.subr.bf16.mxu0 0
    %1218 = vmatpush1.bf16.msra.mxu0 %v1209
    %1219 = vmatprep.subr.bf16.mxu0 0
    %1220 = vmatpush1.bf16.msra.mxu0 0
    %1221 = vmatprep.subr.bf16.mxu0 0
    %1222 = vmatpush1.bf16.msra.mxu0 0
    %1223 = vmatprep.subr.bf16.mxu0 0
    %1224 = vmatpush1.bf16.msra.mxu0 0
    %1225 = vmatprep.subr.bf16.mxu0 0
    %1226 = vmatpush1.bf16.msra.mxu0 0
    %1227 = vmatprep.subr.bf16.mxu0 0
    %1228 = vmatpush1.bf16.msra.mxu0 0
    %1229 = vmatprep.subr.bf16.mxu0 0
    %1230 = vmatpush1.bf16.msra.mxu0 0
    %1231 = vmatprep.subr.bf16.mxu0 0
    %1232 = vmatpush1.bf16.msra.mxu0 0
    %1233 = vmatprep.subr.bf16.mxu0 0
    %1234 = vmatpush1.bf16.msra.mxu0 0
    %1235 = vmatprep.subr.bf16.mxu0 0
    %1236 = vmatpush1.bf16.msra.mxu0 0
    %1237 = vmatprep.subr.bf16.mxu0 0
    %1238 = vmatpush1.bf16.msra.mxu0 0
    %1239 = vmatprep.subr.bf16.mxu0 0
    %1240 = vmatpush1.bf16.msra.mxu0 0
    %1241 = vmatprep.subr.bf16.mxu0 0
    %1242 = vmatpush1.bf16.msra.mxu0 0
    %1243 = vmatprep.subr.bf16.mxu0 0
    %1244 = vmatpush1.bf16.msra.mxu0 0
    %1245 = vmatprep.subr.bf16.mxu0 0
    %1246 = vmatpush1.bf16.msra.mxu0 0
    %1247 = vmatprep.mubr.bf16.mxu0 0
    %1248 = vmatmul.mubr.bf16.gmra.mrb[0].mxu0 %v1213
    %v1249 = vpop.f32.mrb[0].mxu0
    %v1250 = vadd.f32 %v1199, %v1249
    %v1251 = vpop.f32.mrb[0].mxu0
    %v1252 = vpop.f32.mrb[0].mxu0
    %v1253 = vadd.f32 %v1199, %v1252
    %v1254 = vpop.f32.mrb[0].mxu0
    %1255 = vdwg.mxu0
    %v1256 = vld [vmem:[%s11 + $0xa] sm:$0x1]
    %v1257 = vld [vmem:[%s11 + $0xb] sm:$0x1]
    %v1258 = vmul.f32 %v1250, %v93
    %v1259 = vmul.f32 %v1253, %v94
    %v1260 = vmul.f32 %v1250, %v95
    %v1261 = vmul.f32 %v1253, %v96
    %v1262 = vmul.f32 %v1250, %v97
    %v1263 = vmul.f32 %v1253, %v98
    %v1264 = vmul.f32 %v1250, %v99
    %v1265 = vmul.f32 %v1253, %v100
    %v1266 = vpack.c.bf16 %v1259, %v1258
    %v1267 = vpack.c.bf16 %v1261, %v1260
    %v1268 = vpack.c.bf16 %v1263, %v1262
    %v1269 = vpack.c.bf16 %v1265, %v1264
    %v1270 = vpack.c.bf16 %v1253, %v1250
    %1272 = vrot.lane.b32.xlu0 %v1270, 96
    %v1273 = vpop.permute.xlu0 %1272
    %v1275 = vsel %vm53, %v1266, 0
    %v1278 = vsel %vm53, %v1267, 0
    %v1281 = vsel %vm53, %v1268, 0
    %v1284 = vsel %vm53, %v1269, 0
    %v1287 = vsel %vm53, %v1273, 0
    %1289 = vmatprep.subr.bf16.mxu0 0
    %1290 = vmatpush1.bf16.xpose.msra.mxu0 %v1287
    %1291 = vmatprep.subr.bf16.mxu0 0
    %1292 = vmatpush1.bf16.xpose.msra.mxu0 0
    %1293 = vmatprep.subr.bf16.mxu0 0
    %1294 = vmatpush1.bf16.xpose.msra.mxu0 0
    %1295 = vmatprep.subr.bf16.mxu0 0
    %1296 = vmatpush1.bf16.xpose.msra.mxu0 0
    %1297 = vmatprep.subr.bf16.mxu0 0
    %1298 = vmatpush1.bf16.xpose.msra.mxu0 0
    %1299 = vmatprep.subr.bf16.mxu0 0
    %1300 = vmatpush1.bf16.xpose.msra.mxu0 0
    %1301 = vmatprep.subr.bf16.mxu0 0
    %1302 = vmatpush1.bf16.xpose.msra.mxu0 0
    %1303 = vmatprep.subr.bf16.mxu0 0
    %1304 = vmatpush1.bf16.xpose.msra.mxu0 0
    %1305 = vmatprep.subr.bf16.mxu0 0
    %1306 = vmatpush1.bf16.xpose.msra.mxu0 0
    %1307 = vmatprep.subr.bf16.mxu0 0
    %1308 = vmatpush1.bf16.xpose.msra.mxu0 0
    %1309 = vmatprep.subr.bf16.mxu0 0
    %1310 = vmatpush1.bf16.xpose.msra.mxu0 0
    %1311 = vmatprep.subr.bf16.mxu0 0
    %1312 = vmatpush1.bf16.xpose.msra.mxu0 0
    %1313 = vmatprep.subr.bf16.mxu0 0
    %1314 = vmatpush1.bf16.xpose.msra.mxu0 0
    %1315 = vmatprep.subr.bf16.mxu0 0
    %1316 = vmatpush1.bf16.xpose.msra.mxu0 0
    %1317 = vmatprep.subr.bf16.mxu0 0
    %1318 = vmatpush1.bf16.xpose.msra.mxu0 0
    %1319 = vmatprep.subr.bf16.mxu0 0
    %1320 = vmatpush1.bf16.xpose.msra.mxu0 0
    %1321 = vmatprep.mubr.bf16.mxu0 0
    %1322 = vmatmul.mubr.bf16.gmra.mrb[0].mxu0 %v1275
    %v1323 = vpop.f32.mrb[0].mxu0
    %v1324 = vadd.f32 %v101, %v1323
    %v1325 = vpop.f32.mrb[0].mxu0
    %v1326 = vpop.f32.mrb[0].mxu0
    %v1327 = vadd.f32 %v102, %v1326
    %v1328 = vpop.f32.mrb[0].mxu0
    %1329 = vmatprep.mubr.bf16.mxu0 0
    %1330 = vmatmul.mubr.bf16.gmra.mrb[0].mxu0 %v1278
    %v1331 = vpop.f32.mrb[0].mxu0
    %v1332 = vadd.f32 %v103, %v1331
    %v1333 = vpop.f32.mrb[0].mxu0
    %v1334 = vpop.f32.mrb[0].mxu0
    %v1335 = vadd.f32 %v104, %v1334
    %v1336 = vpop.f32.mrb[0].mxu0
    %1337 = vmatprep.mubr.bf16.mxu0 0
    %1338 = vmatmul.mubr.bf16.gmra.mrb[0].mxu0 %v1281
    %v1339 = vpop.f32.mrb[0].mxu0
    %v1340 = vadd.f32 %v105, %v1339
    %v1341 = vpop.f32.mrb[0].mxu0
    %v1342 = vpop.f32.mrb[0].mxu0
    %v1343 = vadd.f32 %v106, %v1342
    %v1344 = vpop.f32.mrb[0].mxu0
    %1345 = vmatprep.mubr.bf16.mxu0 0
    %1346 = vmatmul.mubr.bf16.gmra.mrb[0].mxu0 %v1284
    %v1347 = vpop.f32.mrb[0].mxu0
    %v1348 = vadd.f32 %v107, %v1347
    %v1349 = vpop.f32.mrb[0].mxu0
    %v1350 = vpop.f32.mrb[0].mxu0
    %v1351 = vadd.f32 %v108, %v1350
    %v1352 = vpop.f32.mrb[0].mxu0
    %1353 = vdwg.mxu0
    %v1354 = vsel %vm353, %v1324, -inf
    %1355 = vmax.xlane.f32.xlu0 %v1354
    %v1356 = vpop.xlane.xlu0 %1355
    %v1357 = vsel %vm353, %v1327, -inf
    %1358 = vmax.xlane.f32.xlu0 %v1357
    %v1359 = vpop.xlane.xlu0 %1358
    %v1360 = vsel %vm353, %v1332, -inf
    %1361 = vmax.xlane.f32.xlu0 %v1360
    %v1362 = vpop.xlane.xlu0 %1361
    %v1363 = vsel %vm353, %v1335, -inf
    %1364 = vmax.xlane.f32.xlu0 %v1363
    %v1365 = vpop.xlane.xlu0 %1364
    %v1366 = vsel %vm353, %v1340, -inf
    %1367 = vmax.xlane.f32.xlu0 %v1366
    %v1368 = vpop.xlane.xlu0 %1367
    %v1369 = vsel %vm353, %v1343, -inf
    %1370 = vmax.xlane.f32.xlu0 %v1369
    %v1371 = vpop.xlane.xlu0 %1370
    %v1372 = vsel %vm353, %v1348, -inf
    %1373 = vmax.xlane.f32.xlu0 %v1372
    %v1374 = vpop.xlane.xlu0 %1373
    %v1375 = vsel %vm353, %v1351, -inf
    %1376 = vmax.xlane.f32.xlu0 %v1375
    %v1377 = vpop.xlane.xlu0 %1376
    %v1378 = vsub.f32 %v1324, %v1356
    %v1379 = vsub.f32 %v1327, %v1359
    %v1380 = vsub.f32 %v1332, %v1362
    %v1381 = vsub.f32 %v1335, %v1365
    %v1382 = vsub.f32 %v1340, %v1368
    %v1383 = vsub.f32 %v1343, %v1371
    %v1384 = vsub.f32 %v1348, %v1374
    %v1385 = vsub.f32 %v1351, %v1377
    %v1386 = vmul.f32 %v1378, 1.442695
    %v1387 = vpow.pop %v1386
    %v1388 = vmul.f32 %v1379, 1.442695
    %v1389 = vpow.pop %v1388
    %v1390 = vmul.f32 %v1380, 1.442695
    %v1391 = vpow.pop %v1390
    %v1392 = vmul.f32 %v1381, 1.442695
    %v1393 = vpow.pop %v1392
    %v1394 = vmul.f32 %v1382, 1.442695
    %v1395 = vpow.pop %v1394
    %v1396 = vmul.f32 %v1383, 1.442695
    %v1397 = vpow.pop %v1396
    %v1398 = vmul.f32 %v1384, 1.442695
    %v1399 = vpow.pop %v1398
    %v1400 = vmul.f32 %v1385, 1.442695
    %v1401 = vpow.pop %v1400
    %v1402 = vsel %vm353, %v1387, 0.0
    %1403 = vadd.xlane.f32.xlu0 %v1402
    %v1404 = vpop.xlane.xlu0 %1403
    %v1405 = vsel %vm353, %v1389, 0.0
    %1406 = vadd.xlane.f32.xlu0 %v1405
    %v1407 = vpop.xlane.xlu0 %1406
    %v1408 = vsel %vm353, %v1391, 0.0
    %1409 = vadd.xlane.f32.xlu0 %v1408
    %v1410 = vpop.xlane.xlu0 %1409
    %v1411 = vsel %vm353, %v1393, 0.0
    %1412 = vadd.xlane.f32.xlu0 %v1411
    %v1413 = vpop.xlane.xlu0 %1412
    %v1414 = vsel %vm353, %v1395, 0.0
    %1415 = vadd.xlane.f32.xlu0 %v1414
    %v1416 = vpop.xlane.xlu0 %1415
    %v1417 = vsel %vm353, %v1397, 0.0
    %1418 = vadd.xlane.f32.xlu0 %v1417
    %v1419 = vpop.xlane.xlu0 %1418
    %v1420 = vsel %vm353, %v1399, 0.0
    %1421 = vadd.xlane.f32.xlu0 %v1420
    %v1422 = vpop.xlane.xlu0 %1421
    %v1423 = vsel %vm353, %v1401, 0.0
    %1424 = vadd.xlane.f32.xlu0 %v1423
    %v1425 = vpop.xlane.xlu0 %1424
    %v1426 = vrcp.pop %v1404
    %v1427 = vrcp.pop %v1407
    %v1428 = vrcp.pop %v1410
    %v1429 = vrcp.pop %v1413
    %v1430 = vrcp.pop %v1416
    %v1431 = vrcp.pop %v1419
    %v1432 = vrcp.pop %v1422
    %v1433 = vrcp.pop %v1425
    %v1434 = vmul.f32 %v1387, %v1426
    %v1435 = vmul.f32 %v1389, %v1427
    %v1436 = vmul.f32 %v1391, %v1428
    %v1437 = vmul.f32 %v1393, %v1429
    %v1438 = vmul.f32 %v1395, %v1430
    %v1439 = vmul.f32 %v1397, %v1431
    %v1440 = vmul.f32 %v1399, %v1432
    %v1441 = vmul.f32 %v1401, %v1433
    %v1442 = vpack.c.bf16 %v1435, %v1434
    %v1443 = vpack.c.bf16 %v1437, %v1436
    %v1444 = vpack.c.bf16 %v1439, %v1438
    %v1445 = vpack.c.bf16 %v1441, %v1440
    %1446 = vrot.lane.b32.xlu0 %v1270, 64
    %v1447 = vpop.permute.xlu0 %1446
    %v1450 = vsel %vm353, %v1442, 0
    %v1453 = vsel %vm353, %v1443, 0
    %v1456 = vsel %vm353, %v1444, 0
    %v1459 = vsel %vm353, %v1445, 0
    %1461 = vmatprep.subr.bf16.mxu0 0
    %1462 = vmatpush1.bf16.msra.mxu0 %v1447
    %1463 = vmatprep.subr.bf16.mxu0 0
    %1464 = vmatpush1.bf16.msra.mxu0 0
    %1465 = vmatprep.subr.bf16.mxu0 0
    %1466 = vmatpush1.bf16.msra.mxu0 0
    %1467 = vmatprep.subr.bf16.mxu0 0
    %1468 = vmatpush1.bf16.msra.mxu0 0
    %1469 = vmatprep.subr.bf16.mxu0 0
    %1470 = vmatpush1.bf16.msra.mxu0 0
    %1471 = vmatprep.subr.bf16.mxu0 0
    %1472 = vmatpush1.bf16.msra.mxu0 0
    %1473 = vmatprep.subr.bf16.mxu0 0
    %1474 = vmatpush1.bf16.msra.mxu0 0
    %1475 = vmatprep.subr.bf16.mxu0 0
    %1476 = vmatpush1.bf16.msra.mxu0 0
    %1477 = vmatprep.subr.bf16.mxu0 0
    %1478 = vmatpush1.bf16.msra.mxu0 0
    %1479 = vmatprep.subr.bf16.mxu0 0
    %1480 = vmatpush1.bf16.msra.mxu0 0
    %1481 = vmatprep.subr.bf16.mxu0 0
    %1482 = vmatpush1.bf16.msra.mxu0 0
    %1483 = vmatprep.subr.bf16.mxu0 0
    %1484 = vmatpush1.bf16.msra.mxu0 0
    %1485 = vmatprep.subr.bf16.mxu0 0
    %1486 = vmatpush1.bf16.msra.mxu0 0
    %1487 = vmatprep.subr.bf16.mxu0 0
    %1488 = vmatpush1.bf16.msra.mxu0 0
    %1489 = vmatprep.subr.bf16.mxu0 0
    %1490 = vmatpush1.bf16.msra.mxu0 0
    %1491 = vmatprep.subr.bf16.mxu0 0
    %1492 = vmatpush1.bf16.msra.mxu0 0
    %1493 = vmatprep.mubr.bf16.mxu0 0
    %1494 = vmatmul.mubr.bf16.gmra.mrb[0].mxu0 %v1450
    %v1495 = vpop.f32.mrb[0].mxu0
    %v1496 = vadd.f32 0.0, %v1495
    %v1497 = vpop.f32.mrb[0].mxu0
    %v1498 = vpop.f32.mrb[0].mxu0
    %v1499 = vadd.f32 0.0, %v1498
    %v1500 = vpop.f32.mrb[0].mxu0
    %1501 = vmatprep.mubr.bf16.mxu0 0
    %1502 = vmatmul.mubr.bf16.gmra.mrb[0].mxu0 %v1453
    %v1503 = vpop.f32.mrb[0].mxu0
    %v1504 = vadd.f32 0.0, %v1503
    %v1505 = vpop.f32.mrb[0].mxu0
    %v1506 = vpop.f32.mrb[0].mxu0
    %v1507 = vadd.f32 0.0, %v1506
    %v1508 = vpop.f32.mrb[0].mxu0
    %1509 = vmatprep.mubr.bf16.mxu0 0
    %1510 = vmatmul.mubr.bf16.gmra.mrb[0].mxu0 %v1456
    %v1511 = vpop.f32.mrb[0].mxu0
    %v1512 = vadd.f32 0.0, %v1511
    %v1513 = vpop.f32.mrb[0].mxu0
    %v1514 = vpop.f32.mrb[0].mxu0
    %v1515 = vadd.f32 0.0, %v1514
    %v1516 = vpop.f32.mrb[0].mxu0
    %1517 = vmatprep.mubr.bf16.mxu0 0
    %1518 = vmatmul.mubr.bf16.gmra.mrb[0].mxu0 %v1459
    %v1519 = vpop.f32.mrb[0].mxu0
    %v1520 = vadd.f32 0.0, %v1519
    %v1521 = vpop.f32.mrb[0].mxu0
    %v1522 = vpop.f32.mrb[0].mxu0
    %v1523 = vadd.f32 0.0, %v1522
    %v1524 = vpop.f32.mrb[0].mxu0
    %1525 = vdwg.mxu0
    %v1526 = vmul.f32 %v1496, %v93
    %v1527 = vmul.f32 %v1499, %v94
    %v1528 = vmul.f32 %v1504, %v95
    %v1529 = vmul.f32 %v1507, %v96
    %v1530 = vmul.f32 %v1512, %v97
    %v1531 = vmul.f32 %v1515, %v98
    %v1532 = vmul.f32 %v1520, %v99
    %v1533 = vmul.f32 %v1523, %v100
    %v1534 = vadd.f32 %v1526, %v1528
    %v1535 = vadd.f32 %v1527, %v1529
    %v1536 = vadd.f32 %v1534, %v1530
    %v1537 = vadd.f32 %v1535, %v1531
    %v1538 = vadd.f32 %v1536, %v1532
    %v1539 = vadd.f32 %v1537, %v1533
    %v1540 = vadd.f32 %v1538, %v1187
    %v1541 = vadd.f32 %v1539, %v1188
    %v1542 = vsel %vm53, %v1540, 0.0
    %1543 = vadd.xlane.f32.xlu0 %v1542
    %v1544 = vpop.xlane.xlu0 %1543
    %v1545 = vsel %vm53, %v1541, 0.0
    %1546 = vadd.xlane.f32.xlu0 %v1545
    %v1547 = vpop.xlane.xlu0 %1546
    %v1548 = vmul.f32 %v1544, %v60
    %v1549 = vmul.f32 %v1547, %v60
    %v1550 = vsub.f32 %v1540, %v1548
    %v1551 = vsub.f32 %v1541, %v1549
    %v1552 = vmul.f32 %v1550, %v1550
    %v1553 = vmul.f32 %v1551, %v1551
    %v1554 = vsel %vm53, %v1552, 0.0
    %1555 = vadd.xlane.f32.xlu0 %v1554
    %v1556 = vpop.xlane.xlu0 %1555
    %v1557 = vsel %vm53, %v1553, 0.0
    %1558 = vadd.xlane.f32.xlu0 %v1557
    %v1559 = vpop.xlane.xlu0 %1558
    %v1560 = vmul.f32 %v1556, %v60
    %v1561 = vmul.f32 %v1559, %v60
    %v1562 = vadd.f32 %v1560, 1e-05
    %v1563 = vadd.f32 %v1561, 1e-05
    %v1564 = vrsqrt.pop %v1562
    %v1565 = vrsqrt.pop %v1563
    %v1566 = vmul.f32 %v1550, %v1564
    %v1567 = vmul.f32 %v1551, %v1565
    %v1568 = vlaneseq
    %v1569 = vshrl.u32 %v1568, 7
    %v1570 = vsub.s32 0, %v1569
    %v1571 = vrot.slane %v1256, %v1570
    %v1572 = vmul.f32 %v1566, %v1571
    %v1573 = vmul.f32 %v1567, %v1571
    %v1574 = vlaneseq
    %v1575 = vshrl.u32 %v1574, 7
    %v1576 = vsub.s32 0, %v1575
    %v1577 = vrot.slane %v1257, %v1576
    %v1578 = vadd.f32 %v1572, %v1577
    %v1579 = vadd.f32 %v1573, %v1577
    %v1580 = vpack.c.bf16 %v1579, %v1578
    %s1581 = scalar_lea.vmem %s6, 16
    %v1582 = vld [vmem:[%s1581] sm:$0xf]
    %v1583 = vld [vmem:[%s1581 + $0x4] sm:$0xf]
    %v1584 = vld [vmem:[%s1581 + $0x8] sm:$0xf]
    %v1585 = vld [vmem:[%s1581 + $0xc] sm:$0xf]
    %v1586 = vld [vmem:[%s11 + $0xc] sm:$0x1]
    %v1587 = vlaneseq
    %v1588 = vshrl.u32 %v1587, 7
    %v1589 = vsub.s32 0, %v1588
    %v1590 = vrot.slane %v1586, %v1589
    %v1595 = vunpack.c.l.b16 %v1582
    %v1596 = vunpack.c.l.b16 %v1583
    %v1597 = vunpack.c.l.b16 %v1584
    %v1598 = vunpack.c.l.b16 %v1585
    %v1599 = vpack.c.b16 %v1596, %v1595
    %v1600 = vpack.c.b16 %v1598, %v1597
    %v1604 = vsel %vm53, %v1580, 0
    %1606 = vmatprep.subr.bf16.mxu0 0
    %1607 = vmatpush1.bf16.msra.mxu0 %v1599
    %1608 = vmatprep.subr.bf16.mxu0 0
    %1609 = vmatpush1.bf16.msra.mxu0 %v1600
    %1610 = vmatprep.subr.bf16.mxu0 0
    %1611 = vmatpush1.bf16.msra.mxu0 0
    %1612 = vmatprep.subr.bf16.mxu0 0
    %1613 = vmatpush1.bf16.msra.mxu0 0
    %1614 = vmatprep.subr.bf16.mxu0 0
    %1615 = vmatpush1.bf16.msra.mxu0 0
    %1616 = vmatprep.subr.bf16.mxu0 0
    %1617 = vmatpush1.bf16.msra.mxu0 0
    %1618 = vmatprep.subr.bf16.mxu0 0
    %1619 = vmatpush1.bf16.msra.mxu0 0
    %1620 = vmatprep.subr.bf16.mxu0 0
    %1621 = vmatpush1.bf16.msra.mxu0 0
    %1622 = vmatprep.subr.bf16.mxu0 0
    %1623 = vmatpush1.bf16.msra.mxu0 0
    %1624 = vmatprep.subr.bf16.mxu0 0
    %1625 = vmatpush1.bf16.msra.mxu0 0
    %1626 = vmatprep.subr.bf16.mxu0 0
    %1627 = vmatpush1.bf16.msra.mxu0 0
    %1628 = vmatprep.subr.bf16.mxu0 0
    %1629 = vmatpush1.bf16.msra.mxu0 0
    %1630 = vmatprep.subr.bf16.mxu0 0
    %1631 = vmatpush1.bf16.msra.mxu0 0
    %1632 = vmatprep.subr.bf16.mxu0 0
    %1633 = vmatpush1.bf16.msra.mxu0 0
    %1634 = vmatprep.subr.bf16.mxu0 0
    %1635 = vmatpush1.bf16.msra.mxu0 0
    %1636 = vmatprep.subr.bf16.mxu0 0
    %1637 = vmatpush1.bf16.msra.mxu0 0
    %1638 = vmatprep.mubr.bf16.mxu0 0
    %1639 = vmatmul.mubr.bf16.gmra.mrb[0].mxu0 %v1604
    %v1640 = vpop.f32.mrb[0].mxu0
    %v1641 = vadd.f32 %v1590, %v1640
    %v1642 = vpop.f32.mrb[0].mxu0
    %v1643 = vpop.f32.mrb[0].mxu0
    %v1644 = vadd.f32 %v1590, %v1643
    %v1645 = vpop.f32.mrb[0].mxu0
    %1646 = vdwg.mxu0
    %v1647 = vld [vmem:[%s11 + $0xd] sm:$0x1]
    %v1648 = vld [vmem:[%s11 + $0xe] sm:$0x1]
    %v1649 = vmul.f32 %v1641, %v93
    %v1650 = vmul.f32 %v1644, %v94
    %v1651 = vmul.f32 %v1641, %v95
    %v1652 = vmul.f32 %v1644, %v96
    %v1653 = vmul.f32 %v1641, %v97
    %v1654 = vmul.f32 %v1644, %v98
    %v1655 = vmul.f32 %v1641, %v99
    %v1656 = vmul.f32 %v1644, %v100
    %v1657 = vpack.c.bf16 %v1650, %v1649
    %v1658 = vpack.c.bf16 %v1652, %v1651
    %v1659 = vpack.c.bf16 %v1654, %v1653
    %v1660 = vpack.c.bf16 %v1656, %v1655
    %1661 = vrot.lane.b32.xlu0 %v660, 64
    %v1662 = vpop.permute.xlu0 %1661
    %v1664 = vsel %vm53, %v1657, 0
    %v1667 = vsel %vm53, %v1658, 0
    %v1670 = vsel %vm53, %v1659, 0
    %v1673 = vsel %vm53, %v1660, 0
    %v1676 = vsel %vm53, %v1662, 0
    %1678 = vmatprep.subr.bf16.mxu0 0
    %1679 = vmatpush1.bf16.xpose.msra.mxu0 %v1676
    %1680 = vmatprep.subr.bf16.mxu0 0
    %1681 = vmatpush1.bf16.xpose.msra.mxu0 0
    %1682 = vmatprep.subr.bf16.mxu0 0
    %1683 = vmatpush1.bf16.xpose.msra.mxu0 0
    %1684 = vmatprep.subr.bf16.mxu0 0
    %1685 = vmatpush1.bf16.xpose.msra.mxu0 0
    %1686 = vmatprep.subr.bf16.mxu0 0
    %1687 = vmatpush1.bf16.xpose.msra.mxu0 0
    %1688 = vmatprep.subr.bf16.mxu0 0
    %1689 = vmatpush1.bf16.xpose.msra.mxu0 0
    %1690 = vmatprep.subr.bf16.mxu0 0
    %1691 = vmatpush1.bf16.xpose.msra.mxu0 0
    %1692 = vmatprep.subr.bf16.mxu0 0
    %1693 = vmatpush1.bf16.xpose.msra.mxu0 0
    %1694 = vmatprep.subr.bf16.mxu0 0
    %1695 = vmatpush1.bf16.xpose.msra.mxu0 0
    %1696 = vmatprep.subr.bf16.mxu0 0
    %1697 = vmatpush1.bf16.xpose.msra.mxu0 0
    %1698 = vmatprep.subr.bf16.mxu0 0
    %1699 = vmatpush1.bf16.xpose.msra.mxu0 0
    %1700 = vmatprep.subr.bf16.mxu0 0
    %1701 = vmatpush1.bf16.xpose.msra.mxu0 0
    %1702 = vmatprep.subr.bf16.mxu0 0
    %1703 = vmatpush1.bf16.xpose.msra.mxu0 0
    %1704 = vmatprep.subr.bf16.mxu0 0
    %1705 = vmatpush1.bf16.xpose.msra.mxu0 0
    %1706 = vmatprep.subr.bf16.mxu0 0
    %1707 = vmatpush1.bf16.xpose.msra.mxu0 0
    %1708 = vmatprep.subr.bf16.mxu0 0
    %1709 = vmatpush1.bf16.xpose.msra.mxu0 0
    %1710 = vmatprep.mubr.bf16.mxu0 0
    %1711 = vmatmul.mubr.bf16.gmra.mrb[0].mxu0 %v1664
    %v1712 = vpop.f32.mrb[0].mxu0
    %v1713 = vadd.f32 %v109, %v1712
    %v1714 = vpop.f32.mrb[0].mxu0
    %v1715 = vpop.f32.mrb[0].mxu0
    %v1716 = vadd.f32 %v110, %v1715
    %v1717 = vpop.f32.mrb[0].mxu0
    %1718 = vmatprep.mubr.bf16.mxu0 0
    %1719 = vmatmul.mubr.bf16.gmra.mrb[0].mxu0 %v1667
    %v1720 = vpop.f32.mrb[0].mxu0
    %v1721 = vadd.f32 %v111, %v1720
    %v1722 = vpop.f32.mrb[0].mxu0
    %v1723 = vpop.f32.mrb[0].mxu0
    %v1724 = vadd.f32 %v112, %v1723
    %v1725 = vpop.f32.mrb[0].mxu0
    %1726 = vmatprep.mubr.bf16.mxu0 0
    %1727 = vmatmul.mubr.bf16.gmra.mrb[0].mxu0 %v1670
    %v1728 = vpop.f32.mrb[0].mxu0
    %v1729 = vadd.f32 %v113, %v1728
    %v1730 = vpop.f32.mrb[0].mxu0
    %v1731 = vpop.f32.mrb[0].mxu0
    %v1732 = vadd.f32 %v114, %v1731
    %v1733 = vpop.f32.mrb[0].mxu0
    %1734 = vmatprep.mubr.bf16.mxu0 0
    %1735 = vmatmul.mubr.bf16.gmra.mrb[0].mxu0 %v1673
    %v1736 = vpop.f32.mrb[0].mxu0
    %v1737 = vadd.f32 %v115, %v1736
    %v1738 = vpop.f32.mrb[0].mxu0
    %v1739 = vpop.f32.mrb[0].mxu0
    %v1740 = vadd.f32 %v116, %v1739
    %v1741 = vpop.f32.mrb[0].mxu0
    %1742 = vdwg.mxu0
    %v1743 = vsel %vm353, %v1713, -inf
    %1744 = vmax.xlane.f32.xlu0 %v1743
    %v1745 = vpop.xlane.xlu0 %1744
    %v1746 = vsel %vm353, %v1716, -inf
    %1747 = vmax.xlane.f32.xlu0 %v1746
    %v1748 = vpop.xlane.xlu0 %1747
    %v1749 = vsel %vm353, %v1721, -inf
    %1750 = vmax.xlane.f32.xlu0 %v1749
    %v1751 = vpop.xlane.xlu0 %1750
    %v1752 = vsel %vm353, %v1724, -inf
    %1753 = vmax.xlane.f32.xlu0 %v1752
    %v1754 = vpop.xlane.xlu0 %1753
    %v1755 = vsel %vm353, %v1729, -inf
    %1756 = vmax.xlane.f32.xlu0 %v1755
    %v1757 = vpop.xlane.xlu0 %1756
    %v1758 = vsel %vm353, %v1732, -inf
    %1759 = vmax.xlane.f32.xlu0 %v1758
    %v1760 = vpop.xlane.xlu0 %1759
    %v1761 = vsel %vm353, %v1737, -inf
    %1762 = vmax.xlane.f32.xlu0 %v1761
    %v1763 = vpop.xlane.xlu0 %1762
    %v1764 = vsel %vm353, %v1740, -inf
    %1765 = vmax.xlane.f32.xlu0 %v1764
    %v1766 = vpop.xlane.xlu0 %1765
    %v1767 = vsub.f32 %v1713, %v1745
    %v1768 = vsub.f32 %v1716, %v1748
    %v1769 = vsub.f32 %v1721, %v1751
    %v1770 = vsub.f32 %v1724, %v1754
    %v1771 = vsub.f32 %v1729, %v1757
    %v1772 = vsub.f32 %v1732, %v1760
    %v1773 = vsub.f32 %v1737, %v1763
    %v1774 = vsub.f32 %v1740, %v1766
    %v1775 = vmul.f32 %v1767, 1.442695
    %v1776 = vpow.pop %v1775
    %v1777 = vmul.f32 %v1768, 1.442695
    %v1778 = vpow.pop %v1777
    %v1779 = vmul.f32 %v1769, 1.442695
    %v1780 = vpow.pop %v1779
    %v1781 = vmul.f32 %v1770, 1.442695
    %v1782 = vpow.pop %v1781
    %v1783 = vmul.f32 %v1771, 1.442695
    %v1784 = vpow.pop %v1783
    %v1785 = vmul.f32 %v1772, 1.442695
    %v1786 = vpow.pop %v1785
    %v1787 = vmul.f32 %v1773, 1.442695
    %v1788 = vpow.pop %v1787
    %v1789 = vmul.f32 %v1774, 1.442695
    %v1790 = vpow.pop %v1789
    %v1791 = vsel %vm353, %v1776, 0.0
    %1792 = vadd.xlane.f32.xlu0 %v1791
    %v1793 = vpop.xlane.xlu0 %1792
    %v1794 = vsel %vm353, %v1778, 0.0
    %1795 = vadd.xlane.f32.xlu0 %v1794
    %v1796 = vpop.xlane.xlu0 %1795
    %v1797 = vsel %vm353, %v1780, 0.0
    %1798 = vadd.xlane.f32.xlu0 %v1797
    %v1799 = vpop.xlane.xlu0 %1798
    %v1800 = vsel %vm353, %v1782, 0.0
    %1801 = vadd.xlane.f32.xlu0 %v1800
    %v1802 = vpop.xlane.xlu0 %1801
    %v1803 = vsel %vm353, %v1784, 0.0
    %1804 = vadd.xlane.f32.xlu0 %v1803
    %v1805 = vpop.xlane.xlu0 %1804
    %v1806 = vsel %vm353, %v1786, 0.0
    %1807 = vadd.xlane.f32.xlu0 %v1806
    %v1808 = vpop.xlane.xlu0 %1807
    %v1809 = vsel %vm353, %v1788, 0.0
    %1810 = vadd.xlane.f32.xlu0 %v1809
    %v1811 = vpop.xlane.xlu0 %1810
    %v1812 = vsel %vm353, %v1790, 0.0
    %1813 = vadd.xlane.f32.xlu0 %v1812
    %v1814 = vpop.xlane.xlu0 %1813
    %v1815 = vrcp.pop %v1793
    %v1816 = vrcp.pop %v1796
    %v1817 = vrcp.pop %v1799
    %v1818 = vrcp.pop %v1802
    %v1819 = vrcp.pop %v1805
    %v1820 = vrcp.pop %v1808
    %v1821 = vrcp.pop %v1811
    %v1822 = vrcp.pop %v1814
    %v1823 = vmul.f32 %v1776, %v1815
    %v1824 = vmul.f32 %v1778, %v1816
    %v1825 = vmul.f32 %v1780, %v1817
    %v1826 = vmul.f32 %v1782, %v1818
    %v1827 = vmul.f32 %v1784, %v1819
    %v1828 = vmul.f32 %v1786, %v1820
    %v1829 = vmul.f32 %v1788, %v1821
    %v1830 = vmul.f32 %v1790, %v1822
    %v1831 = vpack.c.bf16 %v1824, %v1823
    %v1832 = vpack.c.bf16 %v1826, %v1825
    %v1833 = vpack.c.bf16 %v1828, %v1827
    %v1834 = vpack.c.bf16 %v1830, %v1829
    %1835 = vrot.lane.b32.xlu0 %v660, 32
    %v1836 = vpop.permute.xlu0 %1835
    %v1839 = vsel %vm353, %v1831, 0
    %v1842 = vsel %vm353, %v1832, 0
    %v1845 = vsel %vm353, %v1833, 0
    %v1848 = vsel %vm353, %v1834, 0
    %1850 = vmatprep.subr.bf16.mxu0 0
    %1851 = vmatpush1.bf16.msra.mxu0 %v1836
    %1852 = vmatprep.subr.bf16.mxu0 0
    %1853 = vmatpush1.bf16.msra.mxu0 0
    %1854 = vmatprep.subr.bf16.mxu0 0
    %1855 = vmatpush1.bf16.msra.mxu0 0
    %1856 = vmatprep.subr.bf16.mxu0 0
    %1857 = vmatpush1.bf16.msra.mxu0 0
    %1858 = vmatprep.subr.bf16.mxu0 0
    %1859 = vmatpush1.bf16.msra.mxu0 0
    %1860 = vmatprep.subr.bf16.mxu0 0
    %1861 = vmatpush1.bf16.msra.mxu0 0
    %1862 = vmatprep.subr.bf16.mxu0 0
    %1863 = vmatpush1.bf16.msra.mxu0 0
    %1864 = vmatprep.subr.bf16.mxu0 0
    %1865 = vmatpush1.bf16.msra.mxu0 0
    %1866 = vmatprep.subr.bf16.mxu0 0
    %1867 = vmatpush1.bf16.msra.mxu0 0
    %1868 = vmatprep.subr.bf16.mxu0 0
    %1869 = vmatpush1.bf16.msra.mxu0 0
    %1870 = vmatprep.subr.bf16.mxu0 0
    %1871 = vmatpush1.bf16.msra.mxu0 0
    %1872 = vmatprep.subr.bf16.mxu0 0
    %1873 = vmatpush1.bf16.msra.mxu0 0
    %1874 = vmatprep.subr.bf16.mxu0 0
    %1875 = vmatpush1.bf16.msra.mxu0 0
    %1876 = vmatprep.subr.bf16.mxu0 0
    %1877 = vmatpush1.bf16.msra.mxu0 0
    %1878 = vmatprep.subr.bf16.mxu0 0
    %1879 = vmatpush1.bf16.msra.mxu0 0
    %1880 = vmatprep.subr.bf16.mxu0 0
    %1881 = vmatpush1.bf16.msra.mxu0 0
    %1882 = vmatprep.mubr.bf16.mxu0 0
    %1883 = vmatmul.mubr.bf16.gmra.mrb[0].mxu0 %v1839
    %v1884 = vpop.f32.mrb[0].mxu0
    %v1885 = vadd.f32 0.0, %v1884
    %v1886 = vpop.f32.mrb[0].mxu0
    %v1887 = vpop.f32.mrb[0].mxu0
    %v1888 = vadd.f32 0.0, %v1887
    %v1889 = vpop.f32.mrb[0].mxu0
    %1890 = vmatprep.mubr.bf16.mxu0 0
    %1891 = vmatmul.mubr.bf16.gmra.mrb[0].mxu0 %v1842
    %v1892 = vpop.f32.mrb[0].mxu0
    %v1893 = vadd.f32 0.0, %v1892
    %v1894 = vpop.f32.mrb[0].mxu0
    %v1895 = vpop.f32.mrb[0].mxu0
    %v1896 = vadd.f32 0.0, %v1895
    %v1897 = vpop.f32.mrb[0].mxu0
    %1898 = vmatprep.mubr.bf16.mxu0 0
    %1899 = vmatmul.mubr.bf16.gmra.mrb[0].mxu0 %v1845
    %v1900 = vpop.f32.mrb[0].mxu0
    %v1901 = vadd.f32 0.0, %v1900
    %v1902 = vpop.f32.mrb[0].mxu0
    %v1903 = vpop.f32.mrb[0].mxu0
    %v1904 = vadd.f32 0.0, %v1903
    %v1905 = vpop.f32.mrb[0].mxu0
    %1906 = vmatprep.mubr.bf16.mxu0 0
    %1907 = vmatmul.mubr.bf16.gmra.mrb[0].mxu0 %v1848
    %v1908 = vpop.f32.mrb[0].mxu0
    %v1909 = vadd.f32 0.0, %v1908
    %v1910 = vpop.f32.mrb[0].mxu0
    %v1911 = vpop.f32.mrb[0].mxu0
    %v1912 = vadd.f32 0.0, %v1911
    %v1913 = vpop.f32.mrb[0].mxu0
    %1914 = vdwg.mxu0
    %v1915 = vmul.f32 %v1885, %v93
    %v1916 = vmul.f32 %v1888, %v94
    %v1917 = vmul.f32 %v1893, %v95
    %v1918 = vmul.f32 %v1896, %v96
    %v1919 = vmul.f32 %v1901, %v97
    %v1920 = vmul.f32 %v1904, %v98
    %v1921 = vmul.f32 %v1909, %v99
    %v1922 = vmul.f32 %v1912, %v100
    %v1923 = vadd.f32 %v1915, %v1917
    %v1924 = vadd.f32 %v1916, %v1918
    %v1925 = vadd.f32 %v1923, %v1919
    %v1926 = vadd.f32 %v1924, %v1920
    %v1927 = vadd.f32 %v1925, %v1921
    %v1928 = vadd.f32 %v1926, %v1922
    %v1929 = vadd.f32 %v1927, %v1578
    %v1930 = vadd.f32 %v1928, %v1579
    %v1931 = vsel %vm53, %v1929, 0.0
    %1932 = vadd.xlane.f32.xlu0 %v1931
    %v1933 = vpop.xlane.xlu0 %1932
    %v1934 = vsel %vm53, %v1930, 0.0
    %1935 = vadd.xlane.f32.xlu0 %v1934
    %v1936 = vpop.xlane.xlu0 %1935
    %v1937 = vmul.f32 %v1933, %v60
    %v1938 = vmul.f32 %v1936, %v60
    %v1939 = vsub.f32 %v1929, %v1937
    %v1940 = vsub.f32 %v1930, %v1938
    %v1941 = vmul.f32 %v1939, %v1939
    %v1942 = vmul.f32 %v1940, %v1940
    %v1943 = vsel %vm53, %v1941, 0.0
    %1944 = vadd.xlane.f32.xlu0 %v1943
    %v1945 = vpop.xlane.xlu0 %1944
    %v1946 = vsel %vm53, %v1942, 0.0
    %1947 = vadd.xlane.f32.xlu0 %v1946
    %v1948 = vpop.xlane.xlu0 %1947
    %v1949 = vmul.f32 %v1945, %v60
    %v1950 = vmul.f32 %v1948, %v60
    %v1951 = vadd.f32 %v1949, 1e-05
    %v1952 = vadd.f32 %v1950, 1e-05
    %v1953 = vrsqrt.pop %v1951
    %v1954 = vrsqrt.pop %v1952
    %v1955 = vmul.f32 %v1939, %v1953
    %v1956 = vmul.f32 %v1940, %v1954
    %v1957 = vlaneseq
    %v1958 = vshrl.u32 %v1957, 7
    %v1959 = vsub.s32 0, %v1958
    %v1960 = vrot.slane %v1647, %v1959
    %v1961 = vmul.f32 %v1955, %v1960
    %v1962 = vmul.f32 %v1956, %v1960
    %v1963 = vlaneseq
    %v1964 = vshrl.u32 %v1963, 7
    %v1965 = vsub.s32 0, %v1964
    %v1966 = vrot.slane %v1648, %v1965
    %v1967 = vadd.f32 %v1961, %v1966
    %v1968 = vadd.f32 %v1962, %v1966
    %v1969 = vpack.c.bf16 %v1968, %v1967
    %s1970 = scalar_lea.vmem %s8, 16
    %v1971 = vld [vmem:[%s1970] sm:$0xf]
    %v1972 = vld [vmem:[%s1970 + $0x4] sm:$0xf]
    %v1973 = vld [vmem:[%s1970 + $0x8] sm:$0xf]
    %v1974 = vld [vmem:[%s1970 + $0xc] sm:$0xf]
    %v1975 = vld [vmem:[%s13 + $0x2] sm:$0x1]
    %v1976 = vlaneseq
    %v1977 = vshrl.u32 %v1976, 7
    %v1978 = vsub.s32 0, %v1977
    %v1979 = vrot.slane %v1975, %v1978
    %v1984 = vunpack.c.l.b16 %v1971
    %v1985 = vunpack.c.l.b16 %v1972
    %v1986 = vunpack.c.l.b16 %v1973
    %v1987 = vunpack.c.l.b16 %v1974
    %v1988 = vpack.c.b16 %v1985, %v1984
    %v1989 = vpack.c.b16 %v1987, %v1986
    %v1993 = vsel %vm53, %v1969, 0
    %1995 = vmatprep.subr.bf16.mxu0 0
    %1996 = vmatpush1.bf16.msra.mxu0 %v1988
    %1997 = vmatprep.subr.bf16.mxu0 0
    %1998 = vmatpush1.bf16.msra.mxu0 %v1989
    %1999 = vmatprep.subr.bf16.mxu0 0
    %2000 = vmatpush1.bf16.msra.mxu0 0
    %2001 = vmatprep.subr.bf16.mxu0 0
    %2002 = vmatpush1.bf16.msra.mxu0 0
    %2003 = vmatprep.subr.bf16.mxu0 0
    %2004 = vmatpush1.bf16.msra.mxu0 0
    %2005 = vmatprep.subr.bf16.mxu0 0
    %2006 = vmatpush1.bf16.msra.mxu0 0
    %2007 = vmatprep.subr.bf16.mxu0 0
    %2008 = vmatpush1.bf16.msra.mxu0 0
    %2009 = vmatprep.subr.bf16.mxu0 0
    %2010 = vmatpush1.bf16.msra.mxu0 0
    %2011 = vmatprep.subr.bf16.mxu0 0
    %2012 = vmatpush1.bf16.msra.mxu0 0
    %2013 = vmatprep.subr.bf16.mxu0 0
    %2014 = vmatpush1.bf16.msra.mxu0 0
    %2015 = vmatprep.subr.bf16.mxu0 0
    %2016 = vmatpush1.bf16.msra.mxu0 0
    %2017 = vmatprep.subr.bf16.mxu0 0
    %2018 = vmatpush1.bf16.msra.mxu0 0
    %2019 = vmatprep.subr.bf16.mxu0 0
    %2020 = vmatpush1.bf16.msra.mxu0 0
    %2021 = vmatprep.subr.bf16.mxu0 0
    %2022 = vmatpush1.bf16.msra.mxu0 0
    %2023 = vmatprep.subr.bf16.mxu0 0
    %2024 = vmatpush1.bf16.msra.mxu0 0
    %2025 = vmatprep.subr.bf16.mxu0 0
    %2026 = vmatpush1.bf16.msra.mxu0 0
    %2027 = vmatprep.mubr.bf16.mxu0 0
    %2028 = vmatmul.mubr.bf16.gmra.mrb[0].mxu0 %v1993
    %v2029 = vpop.f32.mrb[0].mxu0
    %v2030 = vadd.f32 %v1979, %v2029
    %v2031 = vpop.f32.mrb[0].mxu0
    %v2032 = vpop.f32.mrb[0].mxu0
    %v2033 = vadd.f32 %v1979, %v2032
    %v2034 = vpop.f32.mrb[0].mxu0
    %2035 = vdwg.mxu0
    %v2036 = vmax.f32 %v2030, 0.0
    %v2037 = vmax.f32 %v2033, 0.0
    %v2038 = vpack.c.bf16 %v2037, %v2036
    %s2039 = scalar_lea.vmem %s9, 64
    %v2040 = vld [vmem:[%s2039] sm:$0xf]
    %v2041 = vld [vmem:[%s2039 + $0x4] sm:$0xf]
    %v2042 = vld [vmem:[%s2039 + $0x8] sm:$0xf]
    %v2043 = vld [vmem:[%s2039 + $0xc] sm:$0xf]
    %v2044 = vld [vmem:[%s2039 + $0x10] sm:$0xf]
    %v2045 = vld [vmem:[%s2039 + $0x14] sm:$0xf]
    %v2046 = vld [vmem:[%s2039 + $0x18] sm:$0xf]
    %v2047 = vld [vmem:[%s2039 + $0x1c] sm:$0xf]
    %v2048 = vld [vmem:[%s2039 + $0x20] sm:$0xf]
    %v2049 = vld [vmem:[%s2039 + $0x24] sm:$0xf]
    %v2050 = vld [vmem:[%s2039 + $0x28] sm:$0xf]
    %v2051 = vld [vmem:[%s2039 + $0x2c] sm:$0xf]
    %v2052 = vld [vmem:[%s2039 + $0x30] sm:$0xf]
    %v2053 = vld [vmem:[%s2039 + $0x34] sm:$0xf]
    %v2054 = vld [vmem:[%s2039 + $0x38] sm:$0xf]
    %v2055 = vld [vmem:[%s2039 + $0x3c] sm:$0xf]
    %v2056 = vld [vmem:[%s11 + $0xf] sm:$0x1]
    %v2057 = vlaneseq
    %v2058 = vshrl.u32 %v2057, 7
    %v2059 = vsub.s32 0, %v2058
    %v2060 = vrot.slane %v2056, %v2059
    %v2077 = vunpack.c.l.b16 %v2040
    %v2078 = vunpack.c.l.b16 %v2041
    %v2079 = vunpack.c.l.b16 %v2042
    %v2080 = vunpack.c.l.b16 %v2043
    %v2081 = vunpack.c.l.b16 %v2044
    %v2082 = vunpack.c.l.b16 %v2045
    %v2083 = vunpack.c.l.b16 %v2046
    %v2084 = vunpack.c.l.b16 %v2047
    %v2085 = vunpack.c.l.b16 %v2048
    %v2086 = vunpack.c.l.b16 %v2049
    %v2087 = vunpack.c.l.b16 %v2050
    %v2088 = vunpack.c.l.b16 %v2051
    %v2089 = vunpack.c.l.b16 %v2052
    %v2090 = vunpack.c.l.b16 %v2053
    %v2091 = vunpack.c.l.b16 %v2054
    %v2092 = vunpack.c.l.b16 %v2055
    %v2093 = vpack.c.b16 %v2078, %v2077
    %v2094 = vpack.c.b16 %v2080, %v2079
    %v2095 = vpack.c.b16 %v2082, %v2081
    %v2096 = vpack.c.b16 %v2084, %v2083
    %v2097 = vpack.c.b16 %v2086, %v2085
    %v2098 = vpack.c.b16 %v2088, %v2087
    %v2099 = vpack.c.b16 %v2090, %v2089
    %v2100 = vpack.c.b16 %v2092, %v2091
    %2109 = vmatprep.subr.bf16.mxu0 0
    %2110 = vmatpush1.bf16.msra.mxu0 %v2093
    %2111 = vmatprep.subr.bf16.mxu0 0
    %2112 = vmatpush1.bf16.msra.mxu0 %v2094
    %2113 = vmatprep.subr.bf16.mxu0 0
    %2114 = vmatpush1.bf16.msra.mxu0 %v2095
    %2115 = vmatprep.subr.bf16.mxu0 0
    %2116 = vmatpush1.bf16.msra.mxu0 %v2096
    %2117 = vmatprep.subr.bf16.mxu0 0
    %2118 = vmatpush1.bf16.msra.mxu0 %v2097
    %2119 = vmatprep.subr.bf16.mxu0 0
    %2120 = vmatpush1.bf16.msra.mxu0 %v2098
    %2121 = vmatprep.subr.bf16.mxu0 0
    %2122 = vmatpush1.bf16.msra.mxu0 %v2099
    %2123 = vmatprep.subr.bf16.mxu0 0
    %2124 = vmatpush1.bf16.msra.mxu0 %v2100
    %2125 = vmatprep.subr.bf16.mxu0 0
    %2126 = vmatpush1.bf16.msra.mxu0 0
    %2127 = vmatprep.subr.bf16.mxu0 0
    %2128 = vmatpush1.bf16.msra.mxu0 0
    %2129 = vmatprep.subr.bf16.mxu0 0
    %2130 = vmatpush1.bf16.msra.mxu0 0
    %2131 = vmatprep.subr.bf16.mxu0 0
    %2132 = vmatpush1.bf16.msra.mxu0 0
    %2133 = vmatprep.subr.bf16.mxu0 0
    %2134 = vmatpush1.bf16.msra.mxu0 0
    %2135 = vmatprep.subr.bf16.mxu0 0
    %2136 = vmatpush1.bf16.msra.mxu0 0
    %2137 = vmatprep.subr.bf16.mxu0 0
    %2138 = vmatpush1.bf16.msra.mxu0 0
    %2139 = vmatprep.subr.bf16.mxu0 0
    %2140 = vmatpush1.bf16.msra.mxu0 0
    %2141 = vmatprep.mubr.bf16.mxu0 0
    %2142 = vmatmul.mubr.bf16.gmra.mrb[0].mxu0 %v2038
    %v2143 = vpop.f32.mrb[0].mxu0
    %v2144 = vadd.f32 %v2060, %v2143
    %v2145 = vpop.f32.mrb[0].mxu0
    %v2146 = vpop.f32.mrb[0].mxu0
    %v2147 = vadd.f32 %v2060, %v2146
    %v2148 = vpop.f32.mrb[0].mxu0
    %2149 = vdwg.mxu0
    %v2150 = vadd.f32 %v2144, %v1967
    %v2151 = vadd.f32 %v2147, %v1968
    %v2152 = vld [vmem:[%s11 + $0x10] sm:$0x1]
    %v2153 = vld [vmem:[%s11 + $0x11] sm:$0x1]
    %v2154 = vsel %vm53, %v2150, 0.0
    %2155 = vadd.xlane.f32.xlu0 %v2154
    %v2156 = vpop.xlane.xlu0 %2155
    %v2157 = vsel %vm53, %v2151, 0.0
    %2158 = vadd.xlane.f32.xlu0 %v2157
    %v2159 = vpop.xlane.xlu0 %2158
    %v2160 = vmul.f32 %v2156, %v60
    %v2161 = vmul.f32 %v2159, %v60
    %v2162 = vsub.f32 %v2150, %v2160
    %v2163 = vsub.f32 %v2151, %v2161
    %v2164 = vmul.f32 %v2162, %v2162
    %v2165 = vmul.f32 %v2163, %v2163
    %v2166 = vsel %vm53, %v2164, 0.0
    %2167 = vadd.xlane.f32.xlu0 %v2166
    %v2168 = vpop.xlane.xlu0 %2167
    %v2169 = vsel %vm53, %v2165, 0.0
    %2170 = vadd.xlane.f32.xlu0 %v2169
    %v2171 = vpop.xlane.xlu0 %2170
    %v2172 = vmul.f32 %v2168, %v60
    %v2173 = vmul.f32 %v2171, %v60
    %v2174 = vadd.f32 %v2172, 1e-05
    %v2175 = vadd.f32 %v2173, 1e-05
    %v2176 = vrsqrt.pop %v2174
    %v2177 = vrsqrt.pop %v2175
    %v2178 = vmul.f32 %v2162, %v2176
    %v2179 = vmul.f32 %v2163, %v2177
    %v2180 = vlaneseq
    %v2181 = vshrl.u32 %v2180, 7
    %v2182 = vsub.s32 0, %v2181
    %v2183 = vrot.slane %v2152, %v2182
    %v2184 = vmul.f32 %v2178, %v2183
    %v2185 = vmul.f32 %v2179, %v2183
    %v2186 = vlaneseq
    %v2187 = vshrl.u32 %v2186, 7
    %v2188 = vsub.s32 0, %v2187
    %v2189 = vrot.slane %v2153, %v2188
    %v2190 = vadd.f32 %v2184, %v2189
    %v2191 = vadd.f32 %v2185, %v2189
    %v2192 = vpack.c.bf16 %v2191, %v2190
    %v2193 = vld [vmem:[%s10] sm:$0xf]
    %v2194 = vld [vmem:[%s10 + $0x4] sm:$0xf]
    %v2195 = vld [vmem:[%s10 + $0x8] sm:$0xf]
    %v2196 = vld [vmem:[%s10 + $0xc] sm:$0xf]
    %v2197 = vld [vmem:[%s13 + $0x3] sm:$0x1]
    %v2198 = vlaneseq
    %v2199 = vshrl.u32 %v2198, 7
    %v2200 = vsub.s32 0, %v2199
    %v2201 = vrot.slane %v2197, %v2200
    %v2206 = vunpack.c.l.b16 %v2193
    %v2207 = vunpack.c.l.b16 %v2194
    %v2208 = vunpack.c.l.b16 %v2195
    %v2209 = vunpack.c.l.b16 %v2196
    %v2210 = vpack.c.b16 %v2207, %v2206
    %v2211 = vpack.c.b16 %v2209, %v2208
    %v2215 = vsel %vm53, %v2192, 0
    %2217 = vmatprep.subr.bf16.mxu0 0
    %2218 = vmatpush1.bf16.msra.mxu0 %v2210
    %2219 = vmatprep.subr.bf16.mxu0 0
    %2220 = vmatpush1.bf16.msra.mxu0 %v2211
    %2221 = vmatprep.subr.bf16.mxu0 0
    %2222 = vmatpush1.bf16.msra.mxu0 0
    %2223 = vmatprep.subr.bf16.mxu0 0
    %2224 = vmatpush1.bf16.msra.mxu0 0
    %2225 = vmatprep.subr.bf16.mxu0 0
    %2226 = vmatpush1.bf16.msra.mxu0 0
    %2227 = vmatprep.subr.bf16.mxu0 0
    %2228 = vmatpush1.bf16.msra.mxu0 0
    %2229 = vmatprep.subr.bf16.mxu0 0
    %2230 = vmatpush1.bf16.msra.mxu0 0
    %2231 = vmatprep.subr.bf16.mxu0 0
    %2232 = vmatpush1.bf16.msra.mxu0 0
    %2233 = vmatprep.subr.bf16.mxu0 0
    %2234 = vmatpush1.bf16.msra.mxu0 0
    %2235 = vmatprep.subr.bf16.mxu0 0
    %2236 = vmatpush1.bf16.msra.mxu0 0
    %2237 = vmatprep.subr.bf16.mxu0 0
    %2238 = vmatpush1.bf16.msra.mxu0 0
    %2239 = vmatprep.subr.bf16.mxu0 0
    %2240 = vmatpush1.bf16.msra.mxu0 0
    %2241 = vmatprep.subr.bf16.mxu0 0
    %2242 = vmatpush1.bf16.msra.mxu0 0
    %2243 = vmatprep.subr.bf16.mxu0 0
    %2244 = vmatpush1.bf16.msra.mxu0 0
    %2245 = vmatprep.subr.bf16.mxu0 0
    %2246 = vmatpush1.bf16.msra.mxu0 0
    %2247 = vmatprep.subr.bf16.mxu0 0
    %2248 = vmatpush1.bf16.msra.mxu0 0
    %2249 = vmatprep.mubr.bf16.mxu0 0
    %2250 = vmatmul.mubr.bf16.gmra.mrb[0].mxu0 %v2215
    %v2251 = vpop.f32.mrb[0].mxu0
    %v2252 = vadd.f32 %v2201, %v2251
    %v2253 = vpop.f32.mrb[0].mxu0
    %v2254 = vpop.f32.mrb[0].mxu0
    %v2255 = vadd.f32 %v2201, %v2254
    %v2256 = vpop.f32.mrb[0].mxu0
    %2257 = vdwg.mxu0
    %2258 = vst [vmem:[#allocation2] sm:$0xff] %v2252
    %2259 = vst [vmem:[#allocation2 + $0x8] sm:$0xff] %v2255
    // Predicated region
    $region58: #{tpu_custom_call.1} parent=1 // pred_check
      _
    $region59: #{tpu_custom_call.1} parent=1 // pred_check_branch
      %2261 = sbr.rel (0) target = $region61
    $region60: #{tpu_custom_call.1} parent=1 // pred_region
      %s2263 = ssub.s32 256, 256
      %2264 = vsyncadd [#allocation3], %s2263
      %s2265 = sshll.u32 [#allocation2], 4
      %s2266 = int_to_ptr.vmem [resolvable:$true] %s2265
      %2271 = dma.vmem_to_hbm [thread:$0]  %s2266, 256, %s14, [#allocation3], 128, 128, 8
    $region61: #{tpu_custom_call.1} parent=1 // pred_fallthru
      _
    // Predicated region
    $region62: #{tpu_custom_call.1} parent=1 // pred_check
      _
    $region63: #{tpu_custom_call.1} parent=1 // pred_check_branch
      %2273 = sbr.rel (0) target = $region65
    $region64: #{tpu_custom_call.1} parent=1 // pred_region
      %2274 = dma.done [#allocation3], 256
    $region65: #{tpu_custom_call.1} parent=1 // pred_fallthru
      _
    %2275 = vsyncpa [#allocation3], 1

</llo_original>
